<compile_context>
chip_gen: v5e
topology: v5e:2x2
jax: 0.10.0
libtpu: 0.0.40
codegen_flags: <defaults>
</compile_context>

<pallas_src>
import jax
import jax.numpy as jnp
from jax import lax
from jax.experimental import pallas as pl
from jax.experimental.pallas import tpu as pltpu


# --------------------------------------------------------------------------- #
# In-kernel helpers (pure jnp, traced inside the Pallas kernel body).
# --------------------------------------------------------------------------- #
def _leaky_relu(x):
    return jnp.where(x >= 0.0, x, 0.2 * x)


def _elu(x):
    # safe form: exp only sees non-positive values in the false branch
    return jnp.where(x > 0.0, x, jnp.exp(jnp.minimum(x, 0.0)) - 1.0)


def _gat_layer_dense(x, g_src, g_trg, sc_trg, w, s_src_pack, s_trg_pack,
                     skip_mat, bias, *, mean_mat, apply_elu):
    """One GATLayerImp3 forward on a block-diagonal batch tile (eval mode).

    x          : (BtN, Fin) f32 node features (Bt graphs stacked)
    g_src      : (BtE, BtN) f32, row e has a 1 at col src[e]   (gather by src)
    g_trg      : (BtE, BtN) f32, row e has a 1 at col trg[e]   (gather by trg)
    sc_trg     : (BtN, BtE) f32, row n has 1s at edges targeting n (scatter-add)
    s_src_pack : (HF, HF) f32 block-diag scoring matrix (lane-dense logits)
    s_trg_pack : (HF, HF) f32 block-diag scoring matrix
    skip_mat   : (Fin, HF) f32 skip projection (or head-broadcast tile matrix)
    mean_mat   : None (concat=True) or (HF, Fout) head-mean matrix
    Returns (BtN, HF) f32 if concat else (BtN, Fout) f32.
    """
    f32 = jnp.float32

    # 1) linear projection (exact f32)
    proj = jnp.dot(x, w, preferred_element_type=f32)                     # (BtN, HF)

    # 2) lift features to edges (exact: 0/1 f32 one-hot gather on the MXU)
    proj_l = jnp.dot(g_src, proj, preferred_element_type=f32)            # (BtE, HF)

    # 3) lane-dense per-edge logits: source logits reuse the lifted features,
    #    target logits are computed per node and gathered by trg.
    s_src_l = jnp.dot(proj_l, s_src_pack, preferred_element_type=f32)    # (BtE, HF)
    s_trg_n = jnp.dot(proj, s_trg_pack, preferred_element_type=f32)      # (BtN, HF)
    s_trg_l = jnp.dot(g_trg, s_trg_n, preferred_element_type=f32)        # (BtE, HF)

    # 4) edge scores + neighborhood-aware softmax (tile-global max, same
    #    normalization as the reference up to the 1e-16 epsilon)
    scores = _leaky_relu(s_src_l + s_trg_l)                              # (BtE, HF)
    gmax = jnp.max(scores, keepdims=True)                                # (1, 1)
    exp_s = jnp.exp(scores - gmax)                                       # (BtE, HF)
    denom_n = jnp.dot(sc_trg, exp_s, preferred_element_type=f32)         # (BtN, HF)
    denom_e = jnp.dot(g_trg, denom_n, preferred_element_type=f32)        # (BtE, HF)
    attn = exp_s / (denom_e + 1e-16)                                     # (BtE, HF)

    # 5) weight lifted features and scatter-add back to target nodes
    weighted = proj_l * attn                                             # (BtE, HF)
    agg = jnp.dot(sc_trg, weighted, preferred_element_type=f32)          # (BtN, HF)

    # 6) skip connection (skip_mat is either skip_W or the head-broadcast tile)
    agg = agg + jnp.dot(x, skip_mat, preferred_element_type=f32)

    # 7) concat / head-mean, bias, activation
    if mean_mat is None:
        out = agg + bias                                                 # (BtN, HF)
    else:
        out = jnp.dot(agg, mean_mat, preferred_element_type=f32) + bias  # (BtN, Fout)
    if apply_elu:
        out = _elu(out)
    return out


# --------------------------------------------------------------------------- #
# Fused 2-layer GAT + mean-pool kernel.  Grid = (B // Bt,), Bt graphs per step.
# --------------------------------------------------------------------------- #
def _gat_model_kernel(x_ref, src_col_ref, trg_col_ref, trg_row_ref,
                      w0_ref, ss0_ref, st0_ref, k0_ref, b0_ref,
                      w1_ref, ss1_ref, st1_ref, k1_ref, b1_ref,
                      mean1_ref, pool_ref, out_ref):
    BtN = x_ref.shape[1]
    BtE = src_col_ref.shape[1]

    x = x_ref[0]                                   # (BtN, Fin)   f32
    src_col = src_col_ref[0]                       # (BtE, 1)     int32 (global ids)
    trg_col = trg_col_ref[0]                       # (BtE, 1)     int32
    trg_row = trg_row_ref[0]                       # (1, BtE)     int32

    # Block-diagonal one-hots built in-kernel (exact 0/1 f32), pre-oriented so
    # every contraction below is a native lane-contracting matmul.
    lane_n = lax.broadcasted_iota(jnp.int32, (BtE, BtN), 1)
    g_src = jnp.where(lane_n == src_col, 1.0, 0.0)            # (BtE, BtN)
    g_trg = jnp.where(lane_n == trg_col, 1.0, 0.0)            # (BtE, BtN)
    sub_n = lax.broadcasted_iota(jnp.int32, (BtN, BtE), 0)
    sc_trg = jnp.where(sub_n == trg_row, 1.0, 0.0)            # (BtN, BtE)

    # layer 0: concat=True, ELU
    h0 = _gat_layer_dense(x, g_src, g_trg, sc_trg,
                          w0_ref[...], ss0_ref[...], st0_ref[...],
                          k0_ref[...], b0_ref[...],
                          mean_mat=None, apply_elu=True)        # (BtN, H*hidden)

    # layer 1: concat=False (mean over heads), no activation
    h1 = _gat_layer_dense(h0, g_src, g_trg, sc_trg,
                          w1_ref[...], ss1_ref[...], st1_ref[...],
                          k1_ref[...], b1_ref[...],
                          mean_mat=mean1_ref[...], apply_elu=False)  # (BtN, out_dim)

    # fused per-graph mean pooling over nodes: (Bt, BtN) @ (BtN, out_dim)
    out_ref[0] = jnp.dot(pool_ref[...], h1, preferred_element_type=jnp.float32)


# --------------------------------------------------------------------------- #
# Host-side constant matrices (hoisted out of the kernel, passed as inputs).
# --------------------------------------------------------------------------- #
def _scoring_pack_dense(a, num_heads, fout):
    """(H, Fout) scoring vector -> (HF, HF) block matrix so proj @ S gives the
    per-head score repeated across each head's Fout lanes (lane-dense)."""
    hf = num_heads * fout
    head = jnp.arange(hf, dtype=jnp.int32) // fout
    block = (head[:, None] == head[None, :]).astype(jnp.float32)          # (HF, HF)
    return block * a.reshape(hf, 1).astype(jnp.float32)


def _head_tile_matrix(fin, num_heads, fout):
    """(Fin, HF) 0/1 matrix; x @ T broadcasts x over heads (Fin == Fout case)."""
    hf = num_heads * fout
    r = jnp.arange(fin, dtype=jnp.int32)[:, None]
    c = jnp.arange(hf, dtype=jnp.int32)[None, :]
    return ((c % fout) == r).astype(jnp.float32)


def _head_mean_matrix(num_heads, fout):
    """(HF, Fout) matrix computing the mean over heads (concat=False layer)."""
    hf = num_heads * fout
    r = jnp.arange(hf, dtype=jnp.int32)[:, None] % fout
    c = jnp.arange(fout, dtype=jnp.int32)[None, :]
    return (r == c).astype(jnp.float32) / float(num_heads)


def _pool_matrix(bt, n):
    """(Bt, Bt*N) matrix computing the per-graph mean over nodes of a tile."""
    r = jnp.arange(bt, dtype=jnp.int32)[:, None]
    c = jnp.arange(bt * n, dtype=jnp.int32)[None, :] // n
    return (r == c).astype(jnp.float32) / float(n)


def _pick_graphs_per_step(batch, n, target_rows=256):
    """Largest divisor Bt of B with Bt*N <= target_rows and >= 2 grid steps
    (keeps the 'parallel' axis spanning both v7x TensorCores)."""
    best = 1
    for bt in range(1, batch + 1):
        if bt * n > target_rows:
            break
        if batch % bt != 0:
            continue
        if batch >= 2 and batch // bt < 2:
            continue
        best = bt
    return best


def _vmem_limit_bytes(bt, n, e, fin, hf0, hf1, out_dim):
    """Derive the VMEM budget from the actual footprint (+4x headroom)."""
    f32 = 4
    btn, bte = bt * n, bt * e
    per_step = (btn * fin + 3 * bte + bt * out_dim) * f32          # pipelined blocks
    weights = (2 * fin * hf0 + 2 * hf0 * hf0 + hf0
               + hf0 * hf1 + 2 * hf1 * hf1 + hf0 * hf1 + out_dim
               + hf1 * out_dim + bt * btn) * f32
    onehots = 3 * btn * bte * f32
    live = (3 * btn * hf0 + 6 * bte * hf0) * f32                   # live intermediates (layer 0 dominates)
    est = 2 * per_step + 2 * weights + onehots + live              # x2: double-buffered pipeline
    return int(min(32 << 20, max(16 << 20, 4 * est)))


# --------------------------------------------------------------------------- #
# Host wrapper: batch-tiling, parameter packing, pallas_call.
# --------------------------------------------------------------------------- #
def gat_model_forward(x, edge_index, params, *, hidden_dim, output_dim,
                      num_heads, graphs_per_step=None):
    """x: (B, N, Fin) f32;  edge_index: (B, 2, E) int32.  Returns (B, output_dim)."""
    B, N, Fin = x.shape
    E = edge_index.shape[-1]
    H = num_heads
    HF0 = H * hidden_dim
    HF1 = H * output_dim

    Bt = graphs_per_step if graphs_per_step is not None else _pick_graphs_per_step(B, N)
    assert B % Bt == 0, f"batch {B} must be divisible by graphs_per_step {Bt}"
    BG = B // Bt
    BtN, BtE = Bt * N, Bt * E

    l0, l1 = params["layer0"], params["layer1"]
    ss0 = _scoring_pack_dense(l0["a_src"], H, hidden_dim)                 # (HF0, HF0)
    st0 = _scoring_pack_dense(l0["a_trg"], H, hidden_dim)
    ss1 = _scoring_pack_dense(l1["a_src"], H, output_dim)                 # (HF1, HF1)
    st1 = _scoring_pack_dense(l1["a_trg"], H, output_dim)
    skip0 = l0["skip_W"] if Fin != hidden_dim else _head_tile_matrix(Fin, H, hidden_dim)
    skip1 = l1["skip_W"] if HF0 != output_dim else _head_tile_matrix(HF0, H, output_dim)
    mean1 = _head_mean_matrix(H, output_dim)                              # (HF1, out_dim)
    pool = _pool_matrix(Bt, N)                                            # (Bt, BtN)

    # Flatten Bt consecutive graphs into one block-diagonal "super graph":
    # node n of local graph g gets global id g*N + n.
    x_flat = x.reshape(BG, BtN, Fin)
    off = ((jnp.arange(B, dtype=jnp.int32) % Bt) * N)[:, None]            # (B, 1)
    src_g = edge_index[:, 0, :].astype(jnp.int32) + off                   # (B, E)
    trg_g = edge_index[:, 1, :].astype(jnp.int32) + off
    src_col = src_g.reshape(BG, BtE, 1)                                   # gather orientation
    trg_col = trg_g.reshape(BG, BtE, 1)
    trg_row = trg_g.reshape(BG, 1, BtE)                                   # scatter orientation

    vmem_limit = _vmem_limit_bytes(Bt, N, E, Fin, HF0, HF1, output_dim)

    out = pl.pallas_call(
        _gat_model_kernel,
        out_shape=jax.ShapeDtypeStruct((BG, Bt, output_dim), jnp.float32),
        grid=(BG,),
        in_specs=[
            pl.BlockSpec((1, BtN, Fin), lambda b: (b, 0, 0)),             # x (tile)
            pl.BlockSpec((1, BtE, 1), lambda b: (b, 0, 0)),               # src ids, column
            pl.BlockSpec((1, BtE, 1), lambda b: (b, 0, 0)),               # trg ids, column
            pl.BlockSpec((1, 1, BtE), lambda b: (b, 0, 0)),               # trg ids, row
            # weights / packed constants: constant block index -> kept resident
            pl.BlockSpec((Fin, HF0), lambda b: (0, 0)),                   # W0
            pl.BlockSpec((HF0, HF0), lambda b: (0, 0)),                   # scoring src 0
            pl.BlockSpec((HF0, HF0), lambda b: (0, 0)),                   # scoring trg 0
            pl.BlockSpec((Fin, HF0), lambda b: (0, 0)),                   # skip 0
            pl.BlockSpec((1, HF0), lambda b: (0, 0)),                     # bias 0
            pl.BlockSpec((HF0, HF1), lambda b: (0, 0)),                   # W1
            pl.BlockSpec((HF1, HF1), lambda b: (0, 0)),                   # scoring src 1
            pl.BlockSpec((HF1, HF1), lambda b: (0, 0)),                   # scoring trg 1
            pl.BlockSpec((HF0, HF1), lambda b: (0, 0)),                   # skip 1
            pl.BlockSpec((1, output_dim), lambda b: (0, 0)),              # bias 1
            pl.BlockSpec((HF1, output_dim), lambda b: (0, 0)),            # head-mean
            pl.BlockSpec((Bt, BtN), lambda b: (0, 0)),                    # node-mean pool
        ],
        out_specs=pl.BlockSpec((1, Bt, output_dim), lambda b: (b, 0, 0)),
        compiler_params=pltpu.CompilerParams(
            dimension_semantics=("parallel",),          # shard tiles across TCs (v7x)
            vmem_limit_bytes=vmem_limit),
    )(x_flat, src_col, trg_col, trg_row,
      l0["W"], ss0, st0, skip0, l0["bias"],
      l1["W"], ss1, st1, skip1, l1["bias"],
      mean1, pool)

    return out.reshape(B, output_dim)


# --------------------------------------------------------------------------- #
# Parameter init (Xavier-uniform style, deterministic).
# --------------------------------------------------------------------------- #
def xavier_uniform(key, shape, fan_in, fan_out):
    bound = (6.0 / (fan_in + fan_out)) ** 0.5
    return jax.random.uniform(key, shape, jnp.float32, -bound, bound)


def init_gat_params(key, input_dim, hidden_dim, output_dim, num_heads):
    H = num_heads
    ks = jax.random.split(key, 8)
    l0 = {
        "W":      xavier_uniform(ks[0], (input_dim, H * hidden_dim), input_dim, H * hidden_dim),
        "a_src":  xavier_uniform(ks[1], (H, hidden_dim), H * hidden_dim, hidden_dim),
        "a_trg":  xavier_uniform(ks[2], (H, hidden_dim), H * hidden_dim, hidden_dim),
        "skip_W": xavier_uniform(ks[3], (input_dim, H * hidden_dim), input_dim, H * hidden_dim),
        "bias":   jnp.zeros((1, H * hidden_dim), jnp.float32),
    }
    fin1 = H * hidden_dim
    l1 = {
        "W":      xavier_uniform(ks[4], (fin1, H * output_dim), fin1, H * output_dim),
        "a_src":  xavier_uniform(ks[5], (H, output_dim), H * output_dim, output_dim),
        "a_trg":  xavier_uniform(ks[6], (H, output_dim), H * output_dim, output_dim),
        "skip_W": xavier_uniform(ks[7], (fin1, H * output_dim), fin1, H * output_dim),
        "bias":   jnp.zeros((1, output_dim), jnp.float32),
    }
    return {"layer0": l0, "layer1": l1}


# --------------------------------------------------------------------------- #
# Independent pure-JAX reference (gather / scatter_add formulation).
# --------------------------------------------------------------------------- #
def _reference_forward(x, edge_index, params, *, hidden_dim, output_dim, num_heads):
    H = num_heads

    def layer(xg, src, trg, p, fout, concat, act):
        n, fin = xg.shape
        proj = (xg @ p["W"]).reshape(n, H, fout)
        s_src = jnp.sum(proj * p["a_src"][None], axis=-1)                 # (N, H)
        s_trg = jnp.sum(proj * p["a_trg"][None], axis=-1)
        z = s_src[src] + s_trg[trg]                                       # (E, H)
        z = jnp.where(z >= 0.0, z, 0.2 * z)
        z = z - jnp.max(z)
        ez = jnp.exp(z)
        den_n = jnp.zeros((n, H), jnp.float32).at[trg].add(ez)
        attn = ez / (den_n[trg] + 1e-16)
        lifted = proj[src]                                                # (E, H, Fout)
        agg = jnp.zeros((n, H, fout), jnp.float32).at[trg].add(lifted * attn[..., None])
        if fout == fin:
            agg = agg + xg[:, None, :]
        else:
            agg = agg + (xg @ p["skip_W"]).reshape(n, H, fout)
        if concat:
            out = agg.reshape(n, H * fout) + p["bias"].reshape(-1)
        else:
            out = jnp.mean(agg, axis=1) + p["bias"].reshape(-1)
        if act:
            out = jnp.where(out > 0.0, out, jnp.exp(jnp.minimum(out, 0.0)) - 1.0)
        return out

    outs = []
    for b in range(x.shape[0]):
        src = edge_index[b, 0]
        trg = edge_index[b, 1]
        h0 = layer(x[b], src, trg, params["layer0"], hidden_dim, True, True)
        h1 = layer(h0, src, trg, params["layer1"], output_dim, False, False)
        outs.append(jnp.mean(h1, axis=0))
    return jnp.stack(outs, axis=0)


# --------------------------------------------------------------------------- #
if __name__ == "__main__":
    # small, deterministic example shapes
    B, N, E = 2, 16, 32
    input_dim, hidden_dim, output_dim, num_heads = 16, 32, 8, 4

    key = jax.random.PRNGKey(0)
    kx, ke, kp = jax.random.split(key, 3)

    x = jax.random.normal(kx, (B, N, input_dim), jnp.float32)
    edge_index = jax.random.randint(ke, (B, 2, E), 0, N, dtype=jnp.int32)

    params = init_gat_params(kp, input_dim, hidden_dim, output_dim, num_heads)

    fwd = jax.jit(lambda xs, ei, ps: gat_model_forward(
        xs, ei, ps, hidden_dim=hidden_dim, output_dim=output_dim,
        num_heads=num_heads))
    out = jax.block_until_ready(fwd(x, edge_index, params))
    assert out.shape == (B, output_dim)

    ref = _reference_forward(x, edge_index, params, hidden_dim=hidden_dim,
                             output_dim=output_dim, num_heads=num_heads)
    err = float(jnp.max(jnp.abs(out - ref)))
    scale = max(1.0, float(jnp.max(jnp.abs(ref))))
    assert err <= 2e-3 * scale, f"kernel vs reference mismatch: {err}"

    print("KERNEL_OK")
</pallas_src>

<mosaic_0001>
module attributes {stable_mosaic.version = 11 : i64} {
  func.func @_gat_model_kernel(%arg0: i32, %arg1: memref<1x16x16xf32, #tpu.memory_space<vmem>>, %arg2: memref<1x32x1xi32, #tpu.memory_space<vmem>>, %arg3: memref<1x32x1xi32, #tpu.memory_space<vmem>>, %arg4: memref<1x1x32xi32, #tpu.memory_space<vmem>>, %arg5: memref<16x128xf32, #tpu.memory_space<vmem>>, %arg6: memref<128x128xf32, #tpu.memory_space<vmem>>, %arg7: memref<128x128xf32, #tpu.memory_space<vmem>>, %arg8: memref<16x128xf32, #tpu.memory_space<vmem>>, %arg9: memref<1x128xf32, #tpu.memory_space<vmem>>, %arg10: memref<128x32xf32, #tpu.memory_space<vmem>>, %arg11: memref<32x32xf32, #tpu.memory_space<vmem>>, %arg12: memref<32x32xf32, #tpu.memory_space<vmem>>, %arg13: memref<128x32xf32, #tpu.memory_space<vmem>>, %arg14: memref<1x8xf32, #tpu.memory_space<vmem>>, %arg15: memref<32x8xf32, #tpu.memory_space<vmem>>, %arg16: memref<1x16xf32, #tpu.memory_space<vmem>>, %arg17: memref<1x1x8xf32, #tpu.memory_space<vmem>>) attributes {dimension_semantics = [#tpu.dimension_semantics<parallel>], iteration_bounds = array<i64: 2>, scalar_prefetch = 0 : i64, scratch_operands = 0 : i64, tpu.core_type = #tpu.core_type<tc>, window_params = [{transform_indices = @transform_0, window_bounds = array<i64: 1, 16, 16>}, {transform_indices = @transform_1, window_bounds = array<i64: 1, 32, 1>}, {transform_indices = @transform_2, window_bounds = array<i64: 1, 32, 1>}, {transform_indices = @transform_3, window_bounds = array<i64: 1, 1, 32>}, {pipeline_mode = #tpu.pipeline_mode<synchronous>, transform_indices = @transform_4, window_bounds = array<i64: 16, 128>}, {pipeline_mode = #tpu.pipeline_mode<synchronous>, transform_indices = @transform_5, window_bounds = array<i64: 128, 128>}, {pipeline_mode = #tpu.pipeline_mode<synchronous>, transform_indices = @transform_6, window_bounds = array<i64: 128, 128>}, {pipeline_mode = #tpu.pipeline_mode<synchronous>, transform_indices = @transform_7, window_bounds = array<i64: 16, 128>}, {pipeline_mode = #tpu.pipeline_mode<synchronous>, transform_indices = @transform_8, window_bounds = array<i64: 1, 128>}, {pipeline_mode = #tpu.pipeline_mode<synchronous>, transform_indices = @transform_9, window_bounds = array<i64: 128, 32>}, {pipeline_mode = #tpu.pipeline_mode<synchronous>, transform_indices = @transform_10, window_bounds = array<i64: 32, 32>}, {pipeline_mode = #tpu.pipeline_mode<synchronous>, transform_indices = @transform_11, window_bounds = array<i64: 32, 32>}, {pipeline_mode = #tpu.pipeline_mode<synchronous>, transform_indices = @transform_12, window_bounds = array<i64: 128, 32>}, {pipeline_mode = #tpu.pipeline_mode<synchronous>, transform_indices = @transform_13, window_bounds = array<i64: 1, 8>}, {pipeline_mode = #tpu.pipeline_mode<synchronous>, transform_indices = @transform_14, window_bounds = array<i64: 32, 8>}, {pipeline_mode = #tpu.pipeline_mode<synchronous>, transform_indices = @transform_15, window_bounds = array<i64: 1, 16>}, {transform_indices = @transform_16, window_bounds = array<i64: 1, 1, 8>}]} {
    %c0 = arith.constant 0 : index
    %c0_0 = arith.constant 0 : index
    %c0_1 = arith.constant 0 : index
    %0 = vector.load %arg1[%c0, %c0_0, %c0_1] : memref<1x16x16xf32, #tpu.memory_space<vmem>>, vector<1x16x16xf32>
    %1 = vector.shape_cast %0 : vector<1x16x16xf32> to vector<16x16xf32>
    %c0_2 = arith.constant 0 : index
    %c0_3 = arith.constant 0 : index
    %c0_4 = arith.constant 0 : index
    %2 = vector.load %arg2[%c0_2, %c0_3, %c0_4] : memref<1x32x1xi32, #tpu.memory_space<vmem>>, vector<1x32x1xi32>
    %3 = vector.shape_cast %2 : vector<1x32x1xi32> to vector<32x1xi32>
    %c0_5 = arith.constant 0 : index
    %c0_6 = arith.constant 0 : index
    %c0_7 = arith.constant 0 : index
    %4 = vector.load %arg3[%c0_5, %c0_6, %c0_7] : memref<1x32x1xi32, #tpu.memory_space<vmem>>, vector<1x32x1xi32>
    %5 = vector.shape_cast %4 : vector<1x32x1xi32> to vector<32x1xi32>
    %c0_8 = arith.constant 0 : index
    %c0_9 = arith.constant 0 : index
    %c0_10 = arith.constant 0 : index
    %6 = vector.load %arg4[%c0_8, %c0_9, %c0_10] : memref<1x1x32xi32, #tpu.memory_space<vmem>>, vector<1x1x32xi32>
    %7 = vector.shape_cast %6 : vector<1x1x32xi32> to vector<1x32xi32>
    %8 = tpu.iota {dimensions = array<i32: 1>} : vector<32x16xi32>
    %9 = vector.broadcast %3 : vector<32x1xi32> to vector<32x16xi32>
    %10 = arith.cmpi eq, %8, %9 : vector<32x16xi32>
    %cst = arith.constant 1.000000e+00 : f32
    %cst_11 = arith.constant 0.000000e+00 : f32
    %11 = vector.broadcast %cst : f32 to vector<32x16xf32>
    %12 = vector.broadcast %cst_11 : f32 to vector<32x16xf32>
    %13 = arith.select %10, %11, %12 : vector<32x16xi1>, vector<32x16xf32>
    %14 = vector.broadcast %5 : vector<32x1xi32> to vector<32x16xi32>
    %15 = arith.cmpi eq, %8, %14 : vector<32x16xi32>
    %cst_12 = arith.constant 1.000000e+00 : f32
    %cst_13 = arith.constant 0.000000e+00 : f32
    %16 = vector.broadcast %cst_12 : f32 to vector<32x16xf32>
    %17 = vector.broadcast %cst_13 : f32 to vector<32x16xf32>
    %18 = arith.select %15, %16, %17 : vector<32x16xi1>, vector<32x16xf32>
    %19 = tpu.iota {dimensions = array<i32: 0>} : vector<16x32xi32>
    %20 = vector.broadcast %7 : vector<1x32xi32> to vector<16x32xi32>
    %21 = arith.cmpi eq, %19, %20 : vector<16x32xi32>
    %cst_14 = arith.constant 1.000000e+00 : f32
    %cst_15 = arith.constant 0.000000e+00 : f32
    %22 = vector.broadcast %cst_14 : f32 to vector<16x32xf32>
    %23 = vector.broadcast %cst_15 : f32 to vector<16x32xf32>
    %24 = arith.select %21, %22, %23 : vector<16x32xi1>, vector<16x32xf32>
    %c0_16 = arith.constant 0 : index
    %c0_17 = arith.constant 0 : index
    %25 = vector.load %arg5[%c0_16, %c0_17] : memref<16x128xf32, #tpu.memory_space<vmem>>, vector<16x128xf32>
    %c0_18 = arith.constant 0 : index
    %c0_19 = arith.constant 0 : index
    %26 = vector.load %arg6[%c0_18, %c0_19] : memref<128x128xf32, #tpu.memory_space<vmem>>, vector<128x128xf32>
    %c0_20 = arith.constant 0 : index
    %c0_21 = arith.constant 0 : index
    %27 = vector.load %arg7[%c0_20, %c0_21] : memref<128x128xf32, #tpu.memory_space<vmem>>, vector<128x128xf32>
    %c0_22 = arith.constant 0 : index
    %c0_23 = arith.constant 0 : index
    %28 = vector.load %arg8[%c0_22, %c0_23] : memref<16x128xf32, #tpu.memory_space<vmem>>, vector<16x128xf32>
    %c0_24 = arith.constant 0 : index
    %c0_25 = arith.constant 0 : index
    %29 = vector.load %arg9[%c0_24, %c0_25] : memref<1x128xf32, #tpu.memory_space<vmem>>, vector<1x128xf32>
    %cst_26 = arith.constant dense<0.000000e+00> : vector<16x128xf32>
    %30 = tpu.matmul %1, %25, %cst_26 {dimension_numbers = #tpu.dot_dimension_numbers<[1], [0], [0], [1], [0, 0, 1, 1], [], []>} : vector<16x16xf32>, vector<16x128xf32>, vector<16x128xf32> -> vector<16x128xf32>
    %cst_27 = arith.constant dense<0.000000e+00> : vector<32x128xf32>
    %31 = tpu.matmul %13, %30, %cst_27 {dimension_numbers = #tpu.dot_dimension_numbers<[1], [0], [0], [1], [0, 0, 1, 1], [], []>} : vector<32x16xf32>, vector<16x128xf32>, vector<32x128xf32> -> vector<32x128xf32>
    %cst_28 = arith.constant dense<0.000000e+00> : vector<32x128xf32>
    %32 = tpu.matmul %31, %26, %cst_28 {dimension_numbers = #tpu.dot_dimension_numbers<[1], [0], [0], [1], [0, 0, 1, 1], [], []>} : vector<32x128xf32>, vector<128x128xf32>, vector<32x128xf32> -> vector<32x128xf32>
    %cst_29 = arith.constant dense<0.000000e+00> : vector<16x128xf32>
    %33 = tpu.matmul %30, %27, %cst_29 {dimension_numbers = #tpu.dot_dimension_numbers<[1], [0], [0], [1], [0, 0, 1, 1], [], []>} : vector<16x128xf32>, vector<128x128xf32>, vector<16x128xf32> -> vector<16x128xf32>
    %cst_30 = arith.constant dense<0.000000e+00> : vector<32x128xf32>
    %34 = tpu.matmul %18, %33, %cst_30 {dimension_numbers = #tpu.dot_dimension_numbers<[1], [0], [0], [1], [0, 0, 1, 1], [], []>} : vector<32x16xf32>, vector<16x128xf32>, vector<32x128xf32> -> vector<32x128xf32>
    %35 = arith.addf %32, %34 : vector<32x128xf32>
    %cst_31 = arith.constant 0.000000e+00 : f32
    %36 = vector.broadcast %cst_31 : f32 to vector<32x128xf32>
    %37 = arith.cmpf oge, %35, %36 : vector<32x128xf32>
    %cst_32 = arith.constant 2.000000e-01 : f32
    %38 = vector.broadcast %cst_32 : f32 to vector<32x128xf32>
    %39 = arith.mulf %38, %35 : vector<32x128xf32>
    %40 = arith.select %37, %35, %39 : vector<32x128xi1>, vector<32x128xf32>
    %41 = vector.shape_cast %40 : vector<32x128xf32> to vector<1x32x128xf32>
    %cst_33 = arith.constant dense<0xFF800000> : vector<1xf32>
    %42 = vector.multi_reduction <maximumf>, %41, %cst_33 [1, 2] : vector<1x32x128xf32> to vector<1xf32>
    %43 = vector.shape_cast %42 : vector<1xf32> to vector<1x1x1xf32>
    %44 = vector.extract %43[0, 0, 0] : f32 from vector<1x1x1xf32>
    %45 = vector.broadcast %44 : f32 to vector<1x1xf32>
    %46 = vector.broadcast %45 : vector<1x1xf32> to vector<32x128xf32>
    %47 = arith.subf %40, %46 : vector<32x128xf32>
    %48 = math.exp %47 : vector<32x128xf32>
    %cst_34 = arith.constant dense<0.000000e+00> : vector<16x128xf32>
    %49 = tpu.matmul %24, %48, %cst_34 {dimension_numbers = #tpu.dot_dimension_numbers<[1], [0], [0], [1], [0, 0, 1, 1], [], []>} : vector<16x32xf32>, vector<32x128xf32>, vector<16x128xf32> -> vector<16x128xf32>
    %cst_35 = arith.constant dense<0.000000e+00> : vector<32x128xf32>
    %50 = tpu.matmul %18, %49, %cst_35 {dimension_numbers = #tpu.dot_dimension_numbers<[1], [0], [0], [1], [0, 0, 1, 1], [], []>} : vector<32x16xf32>, vector<16x128xf32>, vector<32x128xf32> -> vector<32x128xf32>
    %cst_36 = arith.constant 1.000000e-16 : f32
    %51 = vector.broadcast %cst_36 : f32 to vector<32x128xf32>
    %52 = arith.addf %50, %51 : vector<32x128xf32>
    %53 = arith.divf %48, %52 : vector<32x128xf32>
    %54 = arith.mulf %31, %53 : vector<32x128xf32>
    %cst_37 = arith.constant dense<0.000000e+00> : vector<16x128xf32>
    %55 = tpu.matmul %24, %54, %cst_37 {dimension_numbers = #tpu.dot_dimension_numbers<[1], [0], [0], [1], [0, 0, 1, 1], [], []>} : vector<16x32xf32>, vector<32x128xf32>, vector<16x128xf32> -> vector<16x128xf32>
    %cst_38 = arith.constant dense<0.000000e+00> : vector<16x128xf32>
    %56 = tpu.matmul %1, %28, %cst_38 {dimension_numbers = #tpu.dot_dimension_numbers<[1], [0], [0], [1], [0, 0, 1, 1], [], []>} : vector<16x16xf32>, vector<16x128xf32>, vector<16x128xf32> -> vector<16x128xf32>
    %57 = arith.addf %55, %56 : vector<16x128xf32>
    %58 = vector.broadcast %29 : vector<1x128xf32> to vector<16x128xf32>
    %59 = arith.addf %57, %58 : vector<16x128xf32>
    %cst_39 = arith.constant 0.000000e+00 : f32
    %60 = vector.broadcast %cst_39 : f32 to vector<16x128xf32>
    %61 = arith.cmpf ogt, %59, %60 : vector<16x128xf32>
    %cst_40 = arith.constant 0.000000e+00 : f32
    %62 = vector.broadcast %cst_40 : f32 to vector<16x128xf32>
    %63 = arith.minimumf %59, %62 : vector<16x128xf32>
    %64 = math.exp %63 : vector<16x128xf32>
    %cst_41 = arith.constant 1.000000e+00 : f32
    %65 = vector.broadcast %cst_41 : f32 to vector<16x128xf32>
    %66 = arith.subf %64, %65 : vector<16x128xf32>
    %67 = arith.select %61, %59, %66 : vector<16x128xi1>, vector<16x128xf32>
    %c0_42 = arith.constant 0 : index
    %c0_43 = arith.constant 0 : index
    %68 = vector.load %arg10[%c0_42, %c0_43] : memref<128x32xf32, #tpu.memory_space<vmem>>, vector<128x32xf32>
    %c0_44 = arith.constant 0 : index
    %c0_45 = arith.constant 0 : index
    %69 = vector.load %arg11[%c0_44, %c0_45] : memref<32x32xf32, #tpu.memory_space<vmem>>, vector<32x32xf32>
    %c0_46 = arith.constant 0 : index
    %c0_47 = arith.constant 0 : index
    %70 = vector.load %arg12[%c0_46, %c0_47] : memref<32x32xf32, #tpu.memory_space<vmem>>, vector<32x32xf32>
    %c0_48 = arith.constant 0 : index
    %c0_49 = arith.constant 0 : index
    %71 = vector.load %arg13[%c0_48, %c0_49] : memref<128x32xf32, #tpu.memory_space<vmem>>, vector<128x32xf32>
    %c0_50 = arith.constant 0 : index
    %c0_51 = arith.constant 0 : index
    %72 = vector.load %arg14[%c0_50, %c0_51] : memref<1x8xf32, #tpu.memory_space<vmem>>, vector<1x8xf32>
    %c0_52 = arith.constant 0 : index
    %c0_53 = arith.constant 0 : index
    %73 = vector.load %arg15[%c0_52, %c0_53] : memref<32x8xf32, #tpu.memory_space<vmem>>, vector<32x8xf32>
    %cst_54 = arith.constant dense<0.000000e+00> : vector<16x32xf32>
    %74 = tpu.matmul %67, %68, %cst_54 {dimension_numbers = #tpu.dot_dimension_numbers<[1], [0], [0], [1], [0, 0, 1, 1], [], []>} : vector<16x128xf32>, vector<128x32xf32>, vector<16x32xf32> -> vector<16x32xf32>
    %cst_55 = arith.constant dense<0.000000e+00> : vector<32x32xf32>
    %75 = tpu.matmul %13, %74, %cst_55 {dimension_numbers = #tpu.dot_dimension_numbers<[1], [0], [0], [1], [0, 0, 1, 1], [], []>} : vector<32x16xf32>, vector<16x32xf32>, vector<32x32xf32> -> vector<32x32xf32>
    %cst_56 = arith.constant dense<0.000000e+00> : vector<32x32xf32>
    %76 = tpu.matmul %75, %69, %cst_56 {dimension_numbers = #tpu.dot_dimension_numbers<[1], [0], [0], [1], [0, 0, 1, 1], [], []>} : vector<32x32xf32>, vector<32x32xf32>, vector<32x32xf32> -> vector<32x32xf32>
    %cst_57 = arith.constant dense<0.000000e+00> : vector<16x32xf32>
    %77 = tpu.matmul %74, %70, %cst_57 {dimension_numbers = #tpu.dot_dimension_numbers<[1], [0], [0], [1], [0, 0, 1, 1], [], []>} : vector<16x32xf32>, vector<32x32xf32>, vector<16x32xf32> -> vector<16x32xf32>
    %cst_58 = arith.constant dense<0.000000e+00> : vector<32x32xf32>
    %78 = tpu.matmul %18, %77, %cst_58 {dimension_numbers = #tpu.dot_dimension_numbers<[1], [0], [0], [1], [0, 0, 1, 1], [], []>} : vector<32x16xf32>, vector<16x32xf32>, vector<32x32xf32> -> vector<32x32xf32>
    %79 = arith.addf %76, %78 : vector<32x32xf32>
    %cst_59 = arith.constant 0.000000e+00 : f32
    %80 = vector.broadcast %cst_59 : f32 to vector<32x32xf32>
    %81 = arith.cmpf oge, %79, %80 : vector<32x32xf32>
    %cst_60 = arith.constant 2.000000e-01 : f32
    %82 = vector.broadcast %cst_60 : f32 to vector<32x32xf32>
    %83 = arith.mulf %82, %79 : vector<32x32xf32>
    %84 = arith.select %81, %79, %83 : vector<32x32xi1>, vector<32x32xf32>
    %85 = vector.shape_cast %84 : vector<32x32xf32> to vector<1x32x32xf32>
    %cst_61 = arith.constant dense<0xFF800000> : vector<1xf32>
    %86 = vector.multi_reduction <maximumf>, %85, %cst_61 [1, 2] : vector<1x32x32xf32> to vector<1xf32>
    %87 = vector.shape_cast %86 : vector<1xf32> to vector<1x1x1xf32>
    %88 = vector.extract %87[0, 0, 0] : f32 from vector<1x1x1xf32>
    %89 = vector.broadcast %88 : f32 to vector<1x1xf32>
    %90 = vector.broadcast %89 : vector<1x1xf32> to vector<32x32xf32>
    %91 = arith.subf %84, %90 : vector<32x32xf32>
    %92 = math.exp %91 : vector<32x32xf32>
    %cst_62 = arith.constant dense<0.000000e+00> : vector<16x32xf32>
    %93 = tpu.matmul %24, %92, %cst_62 {dimension_numbers = #tpu.dot_dimension_numbers<[1], [0], [0], [1], [0, 0, 1, 1], [], []>} : vector<16x32xf32>, vector<32x32xf32>, vector<16x32xf32> -> vector<16x32xf32>
    %cst_63 = arith.constant dense<0.000000e+00> : vector<32x32xf32>
    %94 = tpu.matmul %18, %93, %cst_63 {dimension_numbers = #tpu.dot_dimension_numbers<[1], [0], [0], [1], [0, 0, 1, 1], [], []>} : vector<32x16xf32>, vector<16x32xf32>, vector<32x32xf32> -> vector<32x32xf32>
    %cst_64 = arith.constant 1.000000e-16 : f32
    %95 = vector.broadcast %cst_64 : f32 to vector<32x32xf32>
    %96 = arith.addf %94, %95 : vector<32x32xf32>
    %97 = arith.divf %92, %96 : vector<32x32xf32>
    %98 = arith.mulf %75, %97 : vector<32x32xf32>
    %cst_65 = arith.constant dense<0.000000e+00> : vector<16x32xf32>
    %99 = tpu.matmul %24, %98, %cst_65 {dimension_numbers = #tpu.dot_dimension_numbers<[1], [0], [0], [1], [0, 0, 1, 1], [], []>} : vector<16x32xf32>, vector<32x32xf32>, vector<16x32xf32> -> vector<16x32xf32>
    %cst_66 = arith.constant dense<0.000000e+00> : vector<16x32xf32>
    %100 = tpu.matmul %67, %71, %cst_66 {dimension_numbers = #tpu.dot_dimension_numbers<[1], [0], [0], [1], [0, 0, 1, 1], [], []>} : vector<16x128xf32>, vector<128x32xf32>, vector<16x32xf32> -> vector<16x32xf32>
    %101 = arith.addf %99, %100 : vector<16x32xf32>
    %cst_67 = arith.constant dense<0.000000e+00> : vector<16x8xf32>
    %102 = tpu.matmul %101, %73, %cst_67 {dimension_numbers = #tpu.dot_dimension_numbers<[1], [0], [0], [1], [0, 0, 1, 1], [], []>} : vector<16x32xf32>, vector<32x8xf32>, vector<16x8xf32> -> vector<16x8xf32>
    %103 = vector.broadcast %72 : vector<1x8xf32> to vector<16x8xf32>
    %104 = arith.addf %102, %103 : vector<16x8xf32>
    %c0_68 = arith.constant 0 : index
    %c0_69 = arith.constant 0 : index
    %105 = vector.load %arg16[%c0_68, %c0_69] : memref<1x16xf32, #tpu.memory_space<vmem>>, vector<1x16xf32>
    %cst_70 = arith.constant dense<0.000000e+00> : vector<1x8xf32>
    %106 = tpu.matmul %105, %104, %cst_70 {dimension_numbers = #tpu.dot_dimension_numbers<[1], [0], [0], [1], [0, 0, 1, 1], [], []>} : vector<1x16xf32>, vector<16x8xf32>, vector<1x8xf32> -> vector<1x8xf32>
    %c0_71 = arith.constant 0 : index
    %c0_72 = arith.constant 0 : index
    %c0_73 = arith.constant 0 : index
    %107 = vector.load %arg17[%c0_71, %c0_72, %c0_73] : memref<1x1x8xf32, #tpu.memory_space<vmem>>, vector<1x1x8xf32>
    %108 = vector.shape_cast %107 : vector<1x1x8xf32> to vector<1x8xf32>
    %109 = vector.shape_cast %106 : vector<1x8xf32> to vector<1x1x8xf32>
    tpu.vector_store %arg17[%c0_71, %c0_72, %c0_73], %109 {strides = array<i32>} : memref<1x1x8xf32, #tpu.memory_space<vmem>>, vector<1x1x8xf32>,
    return
  }
  func.func @transform_0(%arg0: i32) -> (i32, i32, i32) {
    %c0_i32 = arith.constant 0 : i32
    %c0_i32_0 = arith.constant 0 : i32
    %c0_i32_1 = arith.constant 0 : i32
    return %arg0, %c0_i32, %c0_i32_0 : i32, i32, i32
  }
  func.func @transform_1(%arg0: i32) -> (i32, i32, i32) {
    %c0_i32 = arith.constant 0 : i32
    %c0_i32_0 = arith.constant 0 : i32
    %c0_i32_1 = arith.constant 0 : i32
    return %arg0, %c0_i32, %c0_i32_0 : i32, i32, i32
  }
  func.func @transform_2(%arg0: i32) -> (i32, i32, i32) {
    %c0_i32 = arith.constant 0 : i32
    %c0_i32_0 = arith.constant 0 : i32
    %c0_i32_1 = arith.constant 0 : i32
    return %arg0, %c0_i32, %c0_i32_0 : i32, i32, i32
  }
  func.func @transform_3(%arg0: i32) -> (i32, i32, i32) {
    %c0_i32 = arith.constant 0 : i32
    %c0_i32_0 = arith.constant 0 : i32
    %c0_i32_1 = arith.constant 0 : i32
    return %arg0, %c0_i32, %c0_i32_0 : i32, i32, i32
  }
  func.func @transform_4(%arg0: i32) -> (i32, i32) {
    %c0_i32 = arith.constant 0 : i32
    %c0_i32_0 = arith.constant 0 : i32
    %c0_i32_1 = arith.constant 0 : i32
    return %c0_i32, %c0_i32_0 : i32, i32
  }
  func.func @transform_5(%arg0: i32) -> (i32, i32) {
    %c0_i32 = arith.constant 0 : i32
    %c0_i32_0 = arith.constant 0 : i32
    %c0_i32_1 = arith.constant 0 : i32
    return %c0_i32, %c0_i32_0 : i32, i32
  }
  func.func @transform_6(%arg0: i32) -> (i32, i32) {
    %c0_i32 = arith.constant 0 : i32
    %c0_i32_0 = arith.constant 0 : i32
    %c0_i32_1 = arith.constant 0 : i32
    return %c0_i32, %c0_i32_0 : i32, i32
  }
  func.func @transform_7(%arg0: i32) -> (i32, i32) {
    %c0_i32 = arith.constant 0 : i32
    %c0_i32_0 = arith.constant 0 : i32
    %c0_i32_1 = arith.constant 0 : i32
    return %c0_i32, %c0_i32_0 : i32, i32
  }
  func.func @transform_8(%arg0: i32) -> (i32, i32) {
    %c0_i32 = arith.constant 0 : i32
    %c0_i32_0 = arith.constant 0 : i32
    %c0_i32_1 = arith.constant 0 : i32
    return %c0_i32, %c0_i32_0 : i32, i32
  }
  func.func @transform_9(%arg0: i32) -> (i32, i32) {
    %c0_i32 = arith.constant 0 : i32
    %c0_i32_0 = arith.constant 0 : i32
    %c0_i32_1 = arith.constant 0 : i32
    return %c0_i32, %c0_i32_0 : i32, i32
  }
  func.func @transform_10(%arg0: i32) -> (i32, i32) {
    %c0_i32 = arith.constant 0 : i32
    %c0_i32_0 = arith.constant 0 : i32
    %c0_i32_1 = arith.constant 0 : i32
    return %c0_i32, %c0_i32_0 : i32, i32
  }
  func.func @transform_11(%arg0: i32) -> (i32, i32) {
    %c0_i32 = arith.constant 0 : i32
    %c0_i32_0 = arith.constant 0 : i32
    %c0_i32_1 = arith.constant 0 : i32
    return %c0_i32, %c0_i32_0 : i32, i32
  }
  func.func @transform_12(%arg0: i32) -> (i32, i32) {
    %c0_i32 = arith.constant 0 : i32
    %c0_i32_0 = arith.constant 0 : i32
    %c0_i32_1 = arith.constant 0 : i32
    return %c0_i32, %c0_i32_0 : i32, i32
  }
  func.func @transform_13(%arg0: i32) -> (i32, i32) {
    %c0_i32 = arith.constant 0 : i32
    %c0_i32_0 = arith.constant 0 : i32
    %c0_i32_1 = arith.constant 0 : i32
    return %c0_i32, %c0_i32_0 : i32, i32
  }
  func.func @transform_14(%arg0: i32) -> (i32, i32) {
    %c0_i32 = arith.constant 0 : i32
    %c0_i32_0 = arith.constant 0 : i32
    %c0_i32_1 = arith.constant 0 : i32
    return %c0_i32, %c0_i32_0 : i32, i32
  }
  func.func @transform_15(%arg0: i32) -> (i32, i32) {
    %c0_i32 = arith.constant 0 : i32
    %c0_i32_0 = arith.constant 0 : i32
    %c0_i32_1 = arith.constant 0 : i32
    return %c0_i32, %c0_i32_0 : i32, i32
  }
  func.func @transform_16(%arg0: i32) -> (i32, i32, i32) {
    %c0_i32 = arith.constant 0 : i32
    %c0_i32_0 = arith.constant 0 : i32
    %c0_i32_1 = arith.constant 0 : i32
    return %arg0, %c0_i32, %c0_i32_0 : i32, i32, i32
  }
}

</mosaic_0001>

<llo_original>
// kernel: mul.18
$region0: #{mul.18}
  %s0 = inlined_call_operand.vmem [shape: f32[4,32], index: 0, kind: input, shape index: {}]
  %s1 = inlined_call_operand.vmem [shape: f32[128], index: 1, kind: output, shape index: {}]
  $region1: #{mul.18} parent=0
    #allocation0 [shape = 'u8[4096]{0}', space=vmem, size = 0x1000, scoped, tag = 'scoped mem for output reshape']
    #allocation1 [shape = 'u8[4096]{0}', space=vmem, size = 0x1000, scoped, tag = 'scoped mem for input reshape']
    %s3 = ssub.s32 16, 1
    %v4 = vld [vmem:[%s0] sm:%s3]
    %5 = vst [vmem:[#allocation1] sm:%s3] %v4
    %v6 = vld [vmem:[#allocation1] sm:$0x1]
    %vm7 = vcmask 261120
    %8 = vst.msk [vmem:[#allocation0] sm:$0x1] %vm7, %v6
    %s9 = scalar_lea.vmem [#allocation1], 3
    %v10 = vld [vmem:[%s9] sm:$0x1]
    %11 = vrot.lane.b32.xlu0 %v10, 96
    %v12 = vpop.permute.xlu0 %11
    %vm13 = vcmask 1048320
    %14 = vst.msk [vmem:[#allocation0] sm:$0x1] %vm13, %v12
    %s15 = scalar_lea.vmem [#allocation1], 2
    %v16 = vld [vmem:[%s15] sm:$0x1]
    %17 = vrot.lane.b32.xlu0 %v16, 64
    %v18 = vpop.permute.xlu0 %17
    %vm19 = vcmask 785920
    %20 = vst.msk [vmem:[#allocation0] sm:$0x1] %vm19, %v18
    %s21 = scalar_lea.vmem [#allocation1], 1
    %v22 = vld [vmem:[%s21] sm:$0x1]
    %23 = vrot.lane.b32.xlu0 %v22, 32
    %v24 = vpop.permute.xlu0 %23
    %vm25 = vcmask 523520
    %26 = vst.msk [vmem:[#allocation0] sm:$0x1] %vm25, %v24
    %s28 = ssub.s32 2, 1
    %v29 = vld [vmem:[#allocation0] sm:%s28]
    %s31 = ssub.s32 2, 1
    %32 = vst [vmem:[%s1] sm:%s31] %v29

// kernel: mul.26
$region0: #{mul.26}
  %s0 = inlined_call_operand.vmem [shape: f32[4,8], index: 0, kind: input, shape index: {}]
  %s1 = inlined_call_operand.vmem [shape: f32[32], index: 1, kind: output, shape index: {}]
  $region1: #{mul.26} parent=0
    #allocation0 [shape = 'u8[4096]{0}', space=vmem, size = 0x1000, scoped, tag = 'scoped mem for output reshape']
    #allocation1 [shape = 'u8[4096]{0}', space=vmem, size = 0x1000, scoped, tag = 'scoped mem for input reshape']
    %s3 = ssub.s32 16, 1
    %v4 = vld [vmem:[%s0] sm:%s3]
    %5 = vst [vmem:[#allocation1] sm:%s3] %v4
    %v6 = vld [vmem:[#allocation1] sm:$0x1]
    %vm7 = vcmask 64512
    %8 = vst.msk [vmem:[#allocation0] sm:$0x1] %vm7, %v6
    %s9 = scalar_lea.vmem [#allocation1], 3
    %v10 = vld [vmem:[%s9] sm:$0x1]
    %11 = vrot.lane.b32.xlu0 %v10, 24
    %v12 = vpop.permute.xlu0 %11
    %vm13 = vcmask 261312
    %14 = vst.msk [vmem:[#allocation0] sm:$0x1] %vm13, %v12
    %s15 = scalar_lea.vmem [#allocation1], 2
    %v16 = vld [vmem:[%s15] sm:$0x1]
    %17 = vrot.lane.b32.xlu0 %v16, 16
    %v18 = vpop.permute.xlu0 %17
    %vm19 = vcmask 195712
    %20 = vst.msk [vmem:[#allocation0] sm:$0x1] %vm19, %v18
    %s21 = scalar_lea.vmem [#allocation1], 1
    %v22 = vld [vmem:[%s21] sm:$0x1]
    %23 = vrot.lane.b32.xlu0 %v22, 8
    %v24 = vpop.permute.xlu0 %23
    %vm25 = vcmask 130112
    %26 = vst.msk [vmem:[#allocation0] sm:$0x1] %vm25, %v24
    %s28 = ssub.s32 2, 1
    %v29 = vld [vmem:[#allocation0] sm:%s28]
    %s31 = ssub.s32 2, 1
    %32 = vst [vmem:[%s1] sm:%s31] %v29

// kernel: _lambda_.1
$region0: #{_lambda_.1}
  #allocation0 [shape = 'u32[]', space=smem, size = 0x4, offset = 0x4, fixed_abs, tag = 'smem constant byte address 0x4 - core index']
  #allocation1 [shape = 'u32[72,128]{1,0:T(1,128)}', space=vmem, size = 0x9000, scoped, tag = 'internal scratch']
  %s0 = inlined_call_operand.vmem [shape: f32[2,16,16], index: 0, kind: input, shape index: {}]
  %s1 = inlined_call_operand.vmem [shape: s32[2,32,1], index: 1, kind: input, shape index: {}]
  %s2 = inlined_call_operand.vmem [shape: s32[2,32,1], index: 2, kind: input, shape index: {}]
  %s3 = inlined_call_operand.vmem [shape: s32[2,1,32], index: 3, kind: input, shape index: {}]
  %s4 = inlined_call_operand.vmem [shape: f32[16,128], index: 4, kind: input, shape index: {}]
  %s5 = inlined_call_operand.vmem [shape: f32[128,128], index: 5, kind: input, shape index: {}]
  %s6 = inlined_call_operand.vmem [shape: f32[128,128], index: 6, kind: input, shape index: {}]
  %s7 = inlined_call_operand.vmem [shape: f32[16,128], index: 7, kind: input, shape index: {}]
  %s8 = inlined_call_operand.vmem [shape: f32[1,128], index: 8, kind: input, shape index: {}]
  %s9 = inlined_call_operand.vmem [shape: f32[128,32], index: 9, kind: input, shape index: {}]
  %s10 = inlined_call_operand.vmem [shape: f32[32,32], index: 10, kind: input, shape index: {}]
  %s11 = inlined_call_operand.vmem [shape: f32[32,32], index: 11, kind: input, shape index: {}]
  %s12 = inlined_call_operand.vmem [shape: f32[128,32], index: 12, kind: input, shape index: {}]
  %s13 = inlined_call_operand.vmem [shape: f32[1,8], index: 13, kind: input, shape index: {}]
  %s14 = inlined_call_operand.vmem [shape: f32[32,8], index: 14, kind: input, shape index: {}]
  %s15 = inlined_call_operand.vmem [shape: f32[1,16], index: 15, kind: input, shape index: {}]
  %s16 = inlined_call_operand.hbm [shape: f32[2,1,8], index: 16, kind: output, shape index: {}]
  %s17 = sld [smem:[#allocation0]]
  $region97: #{_lambda_.1} parent=0
    _
  %s19 = ssub.s32 1, %s17
  %s20 = scalar_select 0, %s19, %s17
  $region1: #{_lambda_.1} parent=0
    #allocation2 [shape = 'u8[1024]{0}', space=vmem, size = 0x400, scoped, tag = 'output window, operand 0']
    #allocation3 [shape = 's32[2]{0}', space=sflag, size = 0x8, scoped, tag = 'scoped memory for _lambda_.1']
    %21 = vsyncpa [#allocation3], 0
    %s22 = scalar_lea.sflag [#allocation3], 1
    %23 = vsyncpa %s22, 0
    loop: start=0, step=1, limit=4
    $region2: #{_lambda_.1} parent=1 // loop_pre_header
      _
    $region3: #{_lambda_.1} parent=1 // loop_header
      %s25 = sphi 0, %s29
      %p26 = scmp.ge.s32.totalorder %s25, 4
      %s35 = sphi 0, %s37
      %s38 = sphi 0, %s35
      %s39 = sphi 0, %s38
      %s55 = sphi 0, %s39
      %s61 = sphi 0, %s63
      %s64 = sphi 0, %s61
      %s65 = sphi 0, %s64
      %s81 = sphi 0, %s65
      %s87 = sphi 0, %s89
      %s90 = sphi 0, %s87
      %s91 = sphi 0, %s90
      %s107 = sphi 0, %s91
      %s113 = sphi 0, %s115
      %s116 = sphi 0, %s113
      %s117 = sphi 0, %s116
      %s133 = sphi 0, %s117
      %s137 = sphi 0, %s137
      %s139 = sphi 0, %s137
      %s140 = sphi 0, %s139
      %s154 = sphi 0, %s140
      %s158 = sphi 0, %s158
      %s160 = sphi 0, %s158
      %s161 = sphi 0, %s160
      %s175 = sphi 0, %s161
      %s179 = sphi 0, %s179
      %s181 = sphi 0, %s179
      %s182 = sphi 0, %s181
      %s196 = sphi 0, %s182
      %s200 = sphi 0, %s200
      %s202 = sphi 0, %s200
      %s203 = sphi 0, %s202
      %s217 = sphi 0, %s203
      %s221 = sphi 0, %s221
      %s223 = sphi 0, %s221
      %s224 = sphi 0, %s223
      %s238 = sphi 0, %s224
      %s242 = sphi 0, %s242
      %s244 = sphi 0, %s242
      %s245 = sphi 0, %s244
      %s259 = sphi 0, %s245
      %s263 = sphi 0, %s263
      %s265 = sphi 0, %s263
      %s266 = sphi 0, %s265
      %s280 = sphi 0, %s266
      %s284 = sphi 0, %s284
      %s286 = sphi 0, %s284
      %s287 = sphi 0, %s286
      %s301 = sphi 0, %s287
      %s305 = sphi 0, %s305
      %s307 = sphi 0, %s305
      %s308 = sphi 0, %s307
      %s322 = sphi 0, %s308
      %s326 = sphi 0, %s326
      %s328 = sphi 0, %s326
      %s329 = sphi 0, %s328
      %s343 = sphi 0, %s329
      %s347 = sphi 0, %s347
      %s349 = sphi 0, %s347
      %s350 = sphi 0, %s349
      %s364 = sphi 0, %s350
      %s368 = sphi 0, %s368
      %s370 = sphi 0, %s368
      %s371 = sphi 0, %s370
      %s385 = sphi 0, %s371
      %s391 = sphi 0, %s393
      %s394 = sphi 0, %s391
      %s395 = sphi 0, %s394
      %s411 = sphi 0, %s395
    $region4: #{_lambda_.1} parent=1 // loop_header_branch
      %28 = sbr.rel (%p26) target = $region8
    $region5: #{_lambda_.1} parent=1 // loop_body
      %s30 = ssub.s32 %s25, 1
      %s31 = ssub.s32 %s25, 2
      %s32 = sadd.s32 %s25, 1
      %s33 = ssub.s32 %s25, %s32
      %p34 = scmp.eq.s32.totalorder %s33, 0
      %s36 = sadd.s32 %s35, 1
      %s37 = scalar_select %p34, %s35, %s36
      %p40 = pneg %p34
      %p41 = scmp.eq.s32.totalorder %s25, 1
      %p42 = por %p40, %p41
      %p43 = scmp.ne.s32.totalorder %s35, %s38
      %p44 = scmp.eq.s32.totalorder %s25, 0
      %p45 = por %p43, %p44
      %p46 = scmp.ne.s32.totalorder %s35, %s38
      %p47 = scmp.eq.s32.totalorder %s30, 1
      %p48 = por %p46, %p47
      %p49 = scmp.ne.s32.totalorder %s38, %s39
      %p50 = scmp.eq.s32.totalorder %s30, 0
      %p51 = por %p49, %p50
      %p52 = scmp.ne.s32.totalorder %s38, %s39
      %p53 = scmp.eq.s32.totalorder %s31, 1
      %p54 = por %p52, %p53
      %p56 = scmp.ne.s32.totalorder %s39, %s55
      %p57 = scmp.eq.s32.totalorder %s31, 0
      %p58 = por %p56, %p57
      %s59 = ssub.s32 %s25, %s32
      %p60 = scmp.eq.s32.totalorder %s59, 0
      %s62 = sadd.s32 %s61, 1
      %s63 = scalar_select %p60, %s61, %s62
      %p66 = pneg %p60
      %p67 = scmp.eq.s32.totalorder %s25, 1
      %p68 = por %p66, %p67
      %p69 = scmp.ne.s32.totalorder %s61, %s64
      %p70 = scmp.eq.s32.totalorder %s25, 0
      %p71 = por %p69, %p70
      %p72 = scmp.ne.s32.totalorder %s61, %s64
      %p73 = scmp.eq.s32.totalorder %s30, 1
      %p74 = por %p72, %p73
      %p75 = scmp.ne.s32.totalorder %s64, %s65
      %p76 = scmp.eq.s32.totalorder %s30, 0
      %p77 = por %p75, %p76
      %p78 = scmp.ne.s32.totalorder %s64, %s65
      %p79 = scmp.eq.s32.totalorder %s31, 1
      %p80 = por %p78, %p79
      %p82 = scmp.ne.s32.totalorder %s65, %s81
      %p83 = scmp.eq.s32.totalorder %s31, 0
      %p84 = por %p82, %p83
      %s85 = ssub.s32 %s25, %s32
      %p86 = scmp.eq.s32.totalorder %s85, 0
      %s88 = sadd.s32 %s87, 1
      %s89 = scalar_select %p86, %s87, %s88
      %p92 = pneg %p86
      %p93 = scmp.eq.s32.totalorder %s25, 1
      %p94 = por %p92, %p93
      %p95 = scmp.ne.s32.totalorder %s87, %s90
      %p96 = scmp.eq.s32.totalorder %s25, 0
      %p97 = por %p95, %p96
      %p98 = scmp.ne.s32.totalorder %s87, %s90
      %p99 = scmp.eq.s32.totalorder %s30, 1
      %p100 = por %p98, %p99
      %p101 = scmp.ne.s32.totalorder %s90, %s91
      %p102 = scmp.eq.s32.totalorder %s30, 0
      %p103 = por %p101, %p102
      %p104 = scmp.ne.s32.totalorder %s90, %s91
      %p105 = scmp.eq.s32.totalorder %s31, 1
      %p106 = por %p104, %p105
      %p108 = scmp.ne.s32.totalorder %s91, %s107
      %p109 = scmp.eq.s32.totalorder %s31, 0
      %p110 = por %p108, %p109
      %s111 = ssub.s32 %s25, %s32
      %p112 = scmp.eq.s32.totalorder %s111, 0
      %s114 = sadd.s32 %s113, 1
      %s115 = scalar_select %p112, %s113, %s114
      %p118 = pneg %p112
      %p119 = scmp.eq.s32.totalorder %s25, 1
      %p120 = por %p118, %p119
      %p121 = scmp.ne.s32.totalorder %s113, %s116
      %p122 = scmp.eq.s32.totalorder %s25, 0
      %p123 = por %p121, %p122
      %p124 = scmp.ne.s32.totalorder %s113, %s116
      %p125 = scmp.eq.s32.totalorder %s30, 1
      %p126 = por %p124, %p125
      %p127 = scmp.ne.s32.totalorder %s116, %s117
      %p128 = scmp.eq.s32.totalorder %s30, 0
      %p129 = por %p127, %p128
      %p130 = scmp.ne.s32.totalorder %s116, %s117
      %p131 = scmp.eq.s32.totalorder %s31, 1
      %p132 = por %p130, %p131
      %p134 = scmp.ne.s32.totalorder %s117, %s133
      %p135 = scmp.eq.s32.totalorder %s31, 0
      %p136 = por %p134, %p135
      %s138 = sadd.s32 %s137, 1
      %p141 = scmp.eq.s32.totalorder %s25, 1
      %p142 = scmp.ne.s32.totalorder %s137, %s139
      %p143 = scmp.eq.s32.totalorder %s25, 0
      %p144 = por %p142, %p143
      %p145 = scmp.ne.s32.totalorder %s137, %s139
      %p146 = scmp.eq.s32.totalorder %s30, 1
      %p147 = por %p145, %p146
      %p148 = scmp.ne.s32.totalorder %s139, %s140
      %p149 = scmp.eq.s32.totalorder %s30, 0
      %p150 = por %p148, %p149
      %p151 = scmp.ne.s32.totalorder %s139, %s140
      %p152 = scmp.eq.s32.totalorder %s31, 1
      %p153 = por %p151, %p152
      %p155 = scmp.ne.s32.totalorder %s140, %s154
      %p156 = scmp.eq.s32.totalorder %s31, 0
      %p157 = por %p155, %p156
      %s159 = sadd.s32 %s158, 1
      %p162 = scmp.eq.s32.totalorder %s25, 1
      %p163 = scmp.ne.s32.totalorder %s158, %s160
      %p164 = scmp.eq.s32.totalorder %s25, 0
      %p165 = por %p163, %p164
      %p166 = scmp.ne.s32.totalorder %s158, %s160
      %p167 = scmp.eq.s32.totalorder %s30, 1
      %p168 = por %p166, %p167
      %p169 = scmp.ne.s32.totalorder %s160, %s161
      %p170 = scmp.eq.s32.totalorder %s30, 0
      %p171 = por %p169, %p170
      %p172 = scmp.ne.s32.totalorder %s160, %s161
      %p173 = scmp.eq.s32.totalorder %s31, 1
      %p174 = por %p172, %p173
      %p176 = scmp.ne.s32.totalorder %s161, %s175
      %p177 = scmp.eq.s32.totalorder %s31, 0
      %p178 = por %p176, %p177
      %s180 = sadd.s32 %s179, 1
      %p183 = scmp.eq.s32.totalorder %s25, 1
      %p184 = scmp.ne.s32.totalorder %s179, %s181
      %p185 = scmp.eq.s32.totalorder %s25, 0
      %p186 = por %p184, %p185
      %p187 = scmp.ne.s32.totalorder %s179, %s181
      %p188 = scmp.eq.s32.totalorder %s30, 1
      %p189 = por %p187, %p188
      %p190 = scmp.ne.s32.totalorder %s181, %s182
      %p191 = scmp.eq.s32.totalorder %s30, 0
      %p192 = por %p190, %p191
      %p193 = scmp.ne.s32.totalorder %s181, %s182
      %p194 = scmp.eq.s32.totalorder %s31, 1
      %p195 = por %p193, %p194
      %p197 = scmp.ne.s32.totalorder %s182, %s196
      %p198 = scmp.eq.s32.totalorder %s31, 0
      %p199 = por %p197, %p198
      %s201 = sadd.s32 %s200, 1
      %p204 = scmp.eq.s32.totalorder %s25, 1
      %p205 = scmp.ne.s32.totalorder %s200, %s202
      %p206 = scmp.eq.s32.totalorder %s25, 0
      %p207 = por %p205, %p206
      %p208 = scmp.ne.s32.totalorder %s200, %s202
      %p209 = scmp.eq.s32.totalorder %s30, 1
      %p210 = por %p208, %p209
      %p211 = scmp.ne.s32.totalorder %s202, %s203
      %p212 = scmp.eq.s32.totalorder %s30, 0
      %p213 = por %p211, %p212
      %p214 = scmp.ne.s32.totalorder %s202, %s203
      %p215 = scmp.eq.s32.totalorder %s31, 1
      %p216 = por %p214, %p215
      %p218 = scmp.ne.s32.totalorder %s203, %s217
      %p219 = scmp.eq.s32.totalorder %s31, 0
      %p220 = por %p218, %p219
      %s222 = sadd.s32 %s221, 1
      %p225 = scmp.eq.s32.totalorder %s25, 1
      %p226 = scmp.ne.s32.totalorder %s221, %s223
      %p227 = scmp.eq.s32.totalorder %s25, 0
      %p228 = por %p226, %p227
      %p229 = scmp.ne.s32.totalorder %s221, %s223
      %p230 = scmp.eq.s32.totalorder %s30, 1
      %p231 = por %p229, %p230
      %p232 = scmp.ne.s32.totalorder %s223, %s224
      %p233 = scmp.eq.s32.totalorder %s30, 0
      %p234 = por %p232, %p233
      %p235 = scmp.ne.s32.totalorder %s223, %s224
      %p236 = scmp.eq.s32.totalorder %s31, 1
      %p237 = por %p235, %p236
      %p239 = scmp.ne.s32.totalorder %s224, %s238
      %p240 = scmp.eq.s32.totalorder %s31, 0
      %p241 = por %p239, %p240
      %s243 = sadd.s32 %s242, 1
      %p246 = scmp.eq.s32.totalorder %s25, 1
      %p247 = scmp.ne.s32.totalorder %s242, %s244
      %p248 = scmp.eq.s32.totalorder %s25, 0
      %p249 = por %p247, %p248
      %p250 = scmp.ne.s32.totalorder %s242, %s244
      %p251 = scmp.eq.s32.totalorder %s30, 1
      %p252 = por %p250, %p251
      %p253 = scmp.ne.s32.totalorder %s244, %s245
      %p254 = scmp.eq.s32.totalorder %s30, 0
      %p255 = por %p253, %p254
      %p256 = scmp.ne.s32.totalorder %s244, %s245
      %p257 = scmp.eq.s32.totalorder %s31, 1
      %p258 = por %p256, %p257
      %p260 = scmp.ne.s32.totalorder %s245, %s259
      %p261 = scmp.eq.s32.totalorder %s31, 0
      %p262 = por %p260, %p261
      %s264 = sadd.s32 %s263, 1
      %p267 = scmp.eq.s32.totalorder %s25, 1
      %p268 = scmp.ne.s32.totalorder %s263, %s265
      %p269 = scmp.eq.s32.totalorder %s25, 0
      %p270 = por %p268, %p269
      %p271 = scmp.ne.s32.totalorder %s263, %s265
      %p272 = scmp.eq.s32.totalorder %s30, 1
      %p273 = por %p271, %p272
      %p274 = scmp.ne.s32.totalorder %s265, %s266
      %p275 = scmp.eq.s32.totalorder %s30, 0
      %p276 = por %p274, %p275
      %p277 = scmp.ne.s32.totalorder %s265, %s266
      %p278 = scmp.eq.s32.totalorder %s31, 1
      %p279 = por %p277, %p278
      %p281 = scmp.ne.s32.totalorder %s266, %s280
      %p282 = scmp.eq.s32.totalorder %s31, 0
      %p283 = por %p281, %p282
      %s285 = sadd.s32 %s284, 1
      %p288 = scmp.eq.s32.totalorder %s25, 1
      %p289 = scmp.ne.s32.totalorder %s284, %s286
      %p290 = scmp.eq.s32.totalorder %s25, 0
      %p291 = por %p289, %p290
      %p292 = scmp.ne.s32.totalorder %s284, %s286
      %p293 = scmp.eq.s32.totalorder %s30, 1
      %p294 = por %p292, %p293
      %p295 = scmp.ne.s32.totalorder %s286, %s287
      %p296 = scmp.eq.s32.totalorder %s30, 0
      %p297 = por %p295, %p296
      %p298 = scmp.ne.s32.totalorder %s286, %s287
      %p299 = scmp.eq.s32.totalorder %s31, 1
      %p300 = por %p298, %p299
      %p302 = scmp.ne.s32.totalorder %s287, %s301
      %p303 = scmp.eq.s32.totalorder %s31, 0
      %p304 = por %p302, %p303
      %s306 = sadd.s32 %s305, 1
      %p309 = scmp.eq.s32.totalorder %s25, 1
      %p310 = scmp.ne.s32.totalorder %s305, %s307
      %p311 = scmp.eq.s32.totalorder %s25, 0
      %p312 = por %p310, %p311
      %p313 = scmp.ne.s32.totalorder %s305, %s307
      %p314 = scmp.eq.s32.totalorder %s30, 1
      %p315 = por %p313, %p314
      %p316 = scmp.ne.s32.totalorder %s307, %s308
      %p317 = scmp.eq.s32.totalorder %s30, 0
      %p318 = por %p316, %p317
      %p319 = scmp.ne.s32.totalorder %s307, %s308
      %p320 = scmp.eq.s32.totalorder %s31, 1
      %p321 = por %p319, %p320
      %p323 = scmp.ne.s32.totalorder %s308, %s322
      %p324 = scmp.eq.s32.totalorder %s31, 0
      %p325 = por %p323, %p324
      %s327 = sadd.s32 %s326, 1
      %p330 = scmp.eq.s32.totalorder %s25, 1
      %p331 = scmp.ne.s32.totalorder %s326, %s328
      %p332 = scmp.eq.s32.totalorder %s25, 0
      %p333 = por %p331, %p332
      %p334 = scmp.ne.s32.totalorder %s326, %s328
      %p335 = scmp.eq.s32.totalorder %s30, 1
      %p336 = por %p334, %p335
      %p337 = scmp.ne.s32.totalorder %s328, %s329
      %p338 = scmp.eq.s32.totalorder %s30, 0
      %p339 = por %p337, %p338
      %p340 = scmp.ne.s32.totalorder %s328, %s329
      %p341 = scmp.eq.s32.totalorder %s31, 1
      %p342 = por %p340, %p341
      %p344 = scmp.ne.s32.totalorder %s329, %s343
      %p345 = scmp.eq.s32.totalorder %s31, 0
      %p346 = por %p344, %p345
      %s348 = sadd.s32 %s347, 1
      %p351 = scmp.eq.s32.totalorder %s25, 1
      %p352 = scmp.ne.s32.totalorder %s347, %s349
      %p353 = scmp.eq.s32.totalorder %s25, 0
      %p354 = por %p352, %p353
      %p355 = scmp.ne.s32.totalorder %s347, %s349
      %p356 = scmp.eq.s32.totalorder %s30, 1
      %p357 = por %p355, %p356
      %p358 = scmp.ne.s32.totalorder %s349, %s350
      %p359 = scmp.eq.s32.totalorder %s30, 0
      %p360 = por %p358, %p359
      %p361 = scmp.ne.s32.totalorder %s349, %s350
      %p362 = scmp.eq.s32.totalorder %s31, 1
      %p363 = por %p361, %p362
      %p365 = scmp.ne.s32.totalorder %s350, %s364
      %p366 = scmp.eq.s32.totalorder %s31, 0
      %p367 = por %p365, %p366
      %s369 = sadd.s32 %s368, 1
      %p372 = scmp.eq.s32.totalorder %s25, 1
      %p373 = scmp.ne.s32.totalorder %s368, %s370
      %p374 = scmp.eq.s32.totalorder %s25, 0
      %p375 = por %p373, %p374
      %p376 = scmp.ne.s32.totalorder %s368, %s370
      %p377 = scmp.eq.s32.totalorder %s30, 1
      %p378 = por %p376, %p377
      %p379 = scmp.ne.s32.totalorder %s370, %s371
      %p380 = scmp.eq.s32.totalorder %s30, 0
      %p381 = por %p379, %p380
      %p382 = scmp.ne.s32.totalorder %s370, %s371
      %p383 = scmp.eq.s32.totalorder %s31, 1
      %p384 = por %p382, %p383
      %p386 = scmp.ne.s32.totalorder %s371, %s385
      %p387 = scmp.eq.s32.totalorder %s31, 0
      %p388 = por %p386, %p387
      %s389 = ssub.s32 %s25, %s32
      %p390 = scmp.eq.s32.totalorder %s389, 0
      %s392 = sadd.s32 %s391, 1
      %s393 = scalar_select %p390, %s391, %s392
      %p396 = pneg %p390
      %p397 = scmp.eq.s32.totalorder %s25, 1
      %p398 = por %p396, %p397
      %p399 = scmp.ne.s32.totalorder %s391, %s394
      %p400 = scmp.eq.s32.totalorder %s25, 0
      %p401 = por %p399, %p400
      %p402 = scmp.ne.s32.totalorder %s391, %s394
      %p403 = scmp.eq.s32.totalorder %s30, 1
      %p404 = por %p402, %p403
      %p405 = scmp.ne.s32.totalorder %s394, %s395
      %p406 = scmp.eq.s32.totalorder %s30, 0
      %p407 = por %p405, %p406
      %p408 = scmp.ne.s32.totalorder %s394, %s395
      %p409 = scmp.eq.s32.totalorder %s31, 1
      %p410 = por %p408, %p409
      %p412 = scmp.ne.s32.totalorder %s395, %s411
      %p413 = scmp.eq.s32.totalorder %s31, 0
      %p414 = por %p412, %p413
      %p415 = scmp.le.s32.totalorder 1, %s25
      %p416 = scmp.lt.s32.totalorder %s25, 3
      %p417 = pnand %p415, %p416
      %p418 = pneg %p417
      // Predicated region
      $region9: #{_lambda_.1} parent=5 // pred_check
        _
      $region10: #{_lambda_.1} parent=5 // pred_check_branch
        %420 = sbr.rel (%p417) target = $region12
      $region11: #{_lambda_.1} parent=5 // pred_region
        %s421 = ssub.s32 %s25, 1
        // Predicated region
        $region13: #{_lambda_.1} parent=11 // pred_check
          %p422 = pneg %p150
        $region14: #{_lambda_.1} parent=11 // pred_check_branch
          %424 = sbr.rel (%p422) target = $region16
        $region15: #{_lambda_.1} parent=11 // pred_region
          _
        $region16: #{_lambda_.1} parent=11 // pred_fallthru
          _
        // Predicated region
        $region17: #{_lambda_.1} parent=11 // pred_check
          %p425 = pneg %p171
        $region18: #{_lambda_.1} parent=11 // pred_check_branch
          %427 = sbr.rel (%p425) target = $region20
        $region19: #{_lambda_.1} parent=11 // pred_region
          _
        $region20: #{_lambda_.1} parent=11 // pred_fallthru
          _
        // Predicated region
        $region21: #{_lambda_.1} parent=11 // pred_check
          %p428 = pneg %p192
        $region22: #{_lambda_.1} parent=11 // pred_check_branch
          %430 = sbr.rel (%p428) target = $region24
        $region23: #{_lambda_.1} parent=11 // pred_region
          _
        $region24: #{_lambda_.1} parent=11 // pred_fallthru
          _
        // Predicated region
        $region25: #{_lambda_.1} parent=11 // pred_check
          %p431 = pneg %p213
        $region26: #{_lambda_.1} parent=11 // pred_check_branch
          %433 = sbr.rel (%p431) target = $region28
        $region27: #{_lambda_.1} parent=11 // pred_region
          _
        $region28: #{_lambda_.1} parent=11 // pred_fallthru
          _
        // Predicated region
        $region29: #{_lambda_.1} parent=11 // pred_check
          %p434 = pneg %p234
        $region30: #{_lambda_.1} parent=11 // pred_check_branch
          %436 = sbr.rel (%p434) target = $region32
        $region31: #{_lambda_.1} parent=11 // pred_region
          _
        $region32: #{_lambda_.1} parent=11 // pred_fallthru
          _
        // Predicated region
        $region33: #{_lambda_.1} parent=11 // pred_check
          %p437 = pneg %p255
        $region34: #{_lambda_.1} parent=11 // pred_check_branch
          %439 = sbr.rel (%p437) target = $region36
        $region35: #{_lambda_.1} parent=11 // pred_region
          _
        $region36: #{_lambda_.1} parent=11 // pred_fallthru
          _
        // Predicated region
        $region37: #{_lambda_.1} parent=11 // pred_check
          %p440 = pneg %p276
        $region38: #{_lambda_.1} parent=11 // pred_check_branch
          %442 = sbr.rel (%p440) target = $region40
        $region39: #{_lambda_.1} parent=11 // pred_region
          _
        $region40: #{_lambda_.1} parent=11 // pred_fallthru
          _
        // Predicated region
        $region41: #{_lambda_.1} parent=11 // pred_check
          %p443 = pneg %p297
        $region42: #{_lambda_.1} parent=11 // pred_check_branch
          %445 = sbr.rel (%p443) target = $region44
        $region43: #{_lambda_.1} parent=11 // pred_region
          _
        $region44: #{_lambda_.1} parent=11 // pred_fallthru
          _
        // Predicated region
        $region45: #{_lambda_.1} parent=11 // pred_check
          %p446 = pneg %p318
        $region46: #{_lambda_.1} parent=11 // pred_check_branch
          %448 = sbr.rel (%p446) target = $region48
        $region47: #{_lambda_.1} parent=11 // pred_region
          _
        $region48: #{_lambda_.1} parent=11 // pred_fallthru
          _
        // Predicated region
        $region49: #{_lambda_.1} parent=11 // pred_check
          %p449 = pneg %p339
        $region50: #{_lambda_.1} parent=11 // pred_check_branch
          %451 = sbr.rel (%p449) target = $region52
        $region51: #{_lambda_.1} parent=11 // pred_region
          _
        $region52: #{_lambda_.1} parent=11 // pred_fallthru
          _
        // Predicated region
        $region53: #{_lambda_.1} parent=11 // pred_check
          %p452 = pneg %p360
        $region54: #{_lambda_.1} parent=11 // pred_check_branch
          %454 = sbr.rel (%p452) target = $region56
        $region55: #{_lambda_.1} parent=11 // pred_region
          _
        $region56: #{_lambda_.1} parent=11 // pred_fallthru
          _
        // Predicated region
        $region57: #{_lambda_.1} parent=11 // pred_check
          %p455 = pneg %p381
        $region58: #{_lambda_.1} parent=11 // pred_check_branch
          %457 = sbr.rel (%p455) target = $region60
        $region59: #{_lambda_.1} parent=11 // pred_region
          _
        $region60: #{_lambda_.1} parent=11 // pred_fallthru
          _
      $region12: #{_lambda_.1} parent=5 // pred_fallthru
        _
      %p458 = scmp.lt.s32.totalorder %s25, 2
      // Predicated region
      $region61: #{_lambda_.1} parent=5 // pred_check
        %p459 = pneg %p458
      $region62: #{_lambda_.1} parent=5 // pred_check_branch
        %461 = sbr.rel (%p459) target = $region64
      $region63: #{_lambda_.1} parent=5 // pred_region
        // Predicated region
        $region65: #{_lambda_.1} parent=63 // pred_check
          %p462 = pneg %p45
        $region66: #{_lambda_.1} parent=63 // pred_check_branch
          %464 = sbr.rel (%p462) target = $region68
        $region67: #{_lambda_.1} parent=63 // pred_region
          %p465 = scmp.lt.s32.totalorder %s25, 1
          %s466 = scalar_select %p465, %s25, 1
          %s467 = smul.addr %s466, 2
          %s468 = smul.addr %s467, 8
          %s469 = scalar_lea.vmem %s0, %s468
        $region68: #{_lambda_.1} parent=63 // pred_fallthru
          _
        // Predicated region
        $region69: #{_lambda_.1} parent=63 // pred_check
          %p470 = pneg %p71
        $region70: #{_lambda_.1} parent=63 // pred_check_branch
          %472 = sbr.rel (%p470) target = $region72
        $region71: #{_lambda_.1} parent=63 // pred_region
          %p473 = scmp.lt.s32.totalorder %s25, 1
          %s474 = scalar_select %p473, %s25, 1
          %s475 = smul.addr %s474, 4
          %s476 = smul.addr %s475, 8
          %s477 = scalar_lea.vmem %s1, %s476
        $region72: #{_lambda_.1} parent=63 // pred_fallthru
          _
        // Predicated region
        $region73: #{_lambda_.1} parent=63 // pred_check
          %p478 = pneg %p97
        $region74: #{_lambda_.1} parent=63 // pred_check_branch
          %480 = sbr.rel (%p478) target = $region76
        $region75: #{_lambda_.1} parent=63 // pred_region
          %p481 = scmp.lt.s32.totalorder %s25, 1
          %s482 = scalar_select %p481, %s25, 1
          %s483 = smul.addr %s482, 4
          %s484 = smul.addr %s483, 8
          %s485 = scalar_lea.vmem %s2, %s484
        $region76: #{_lambda_.1} parent=63 // pred_fallthru
          _
        // Predicated region
        $region77: #{_lambda_.1} parent=63 // pred_check
          %p486 = pneg %p123
        $region78: #{_lambda_.1} parent=63 // pred_check_branch
          %488 = sbr.rel (%p486) target = $region80
        $region79: #{_lambda_.1} parent=63 // pred_region
          %p489 = scmp.lt.s32.totalorder %s25, 1
          %s490 = scalar_select %p489, %s25, 1
          %s491 = scalar_lea.vmem %s3, %s490
        $region80: #{_lambda_.1} parent=63 // pred_fallthru
          _
      $region64: #{_lambda_.1} parent=5 // pred_fallthru
        _
      %p492 = scmp.le.s32.totalorder 1, %s25
      %p493 = scmp.lt.s32.totalorder %s25, 3
      %p494 = pnand %p492, %p493
      %p495 = pneg %p494
      // Predicated region
      $region81: #{_lambda_.1} parent=5 // pred_check
        _
      $region82: #{_lambda_.1} parent=5 // pred_check_branch
        %497 = sbr.rel (%p494) target = $region84
      $region83: #{_lambda_.1} parent=5 // pred_region
        %s498 = ssub.s32 %s25, 1
        %p499 = scmp.lt.s32.totalorder %s30, 1
        %s500 = scalar_select %p499, %s30, 1
        %s501 = smul.addr %s500, 2
        %s502 = smul.addr %s501, 8
        %s503 = scalar_lea.vmem %s0, %s502
        %p504 = pneg %p51
        %p505 = pneg %p48
        %p506 = scmp.lt.s32.totalorder %s30, 1
        %s507 = scalar_select %p506, %s30, 1
        %s508 = smul.addr %s507, 4
        %s509 = smul.addr %s508, 8
        %s510 = scalar_lea.vmem %s1, %s509
        %p511 = pneg %p77
        %p512 = pneg %p74
        %p513 = scmp.lt.s32.totalorder %s30, 1
        %s514 = scalar_select %p513, %s30, 1
        %s515 = smul.addr %s514, 4
        %s516 = smul.addr %s515, 8
        %s517 = scalar_lea.vmem %s2, %s516
        %p518 = pneg %p103
        %p519 = pneg %p100
        %p520 = scmp.lt.s32.totalorder %s30, 1
        %s521 = scalar_select %p520, %s30, 1
        %s522 = scalar_lea.vmem %s3, %s521
        %p523 = pneg %p129
        %p524 = pneg %p126
        %p525 = pneg %p150
        %p526 = pneg %p147
        %p527 = pneg %p171
        %p528 = pneg %p168
        %p529 = pneg %p192
        %p530 = pneg %p189
        %p531 = pneg %p213
        %p532 = pneg %p210
        %p533 = pneg %p234
        %p534 = pneg %p231
        %p535 = pneg %p255
        %p536 = pneg %p252
        %p537 = pneg %p276
        %p538 = pneg %p273
        %p539 = pneg %p297
        %p540 = pneg %p294
        %p541 = pneg %p318
        %p542 = pneg %p315
        %p543 = pneg %p339
        %p544 = pneg %p336
        %p545 = pneg %p360
        %p546 = pneg %p357
        %p547 = pneg %p381
        %p548 = pneg %p378
        %p549 = pneg %p407
        %p550 = pneg %p404
        %s551 = sand.u32 %s394, 1
        %s552 = scalar_lea.sflag [#allocation3], %s551
        %s553 = sand.u32 %s394, 1
        %s554 = scalar_lea.vmem [#allocation2], %s553
        %p555 = scmp.lt.s32.totalorder %s30, 1
        %s556 = scalar_select %p555, %s30, 1
        %s557 = smul.addr %s556, 2
        %s558 = smul.addr %s557, 8
        %s559 = scalar_lea.vmem %s0, %s558
        %p560 = scmp.lt.s32.totalorder %s30, 1
        %s561 = scalar_select %p560, %s30, 1
        %s562 = smul.addr %s561, 4
        %s563 = smul.addr %s562, 8
        %s564 = scalar_lea.vmem %s1, %s563
        %p565 = scmp.lt.s32.totalorder %s30, 1
        %s566 = scalar_select %p565, %s30, 1
        %s567 = smul.addr %s566, 4
        %s568 = smul.addr %s567, 8
        %s569 = scalar_lea.vmem %s2, %s568
        %p570 = scmp.lt.s32.totalorder %s30, 1
        %s571 = scalar_select %p570, %s30, 1
        %s572 = scalar_lea.vmem %s3, %s571
        %v573 = vld [vmem:[%s559] sm:$0xff]
        %v574 = vld [vmem:[%s559 + $0x8] sm:$0xff]
        %v575 = vld [vmem:[%s564] sm:$0xff]
        %v576 = vld [vmem:[%s564 + $0x8] sm:$0xff]
        %v577 = vld [vmem:[%s564 + $0x10] sm:$0xff]
        %v578 = vld [vmem:[%s564 + $0x18] sm:$0xff]
        %v579 = vld [vmem:[%s569] sm:$0xff]
        %v580 = vld [vmem:[%s569 + $0x8] sm:$0xff]
        %v581 = vld [vmem:[%s569 + $0x10] sm:$0xff]
        %v582 = vld [vmem:[%s569 + $0x18] sm:$0xff]
        %v583 = vld [vmem:[%s572] sm:$0x1]
        %v584 = vlaneseq
        %v585 = vand.u32 %v584, 127
        %586 = vset.pattern.permute.xlu0 0
        %587 = vperm.xlu0 %586, %v575
        %v588 = vpop.permute.xlu0 %587
        %589 = vset.pattern.permute.xlu0 0
        %590 = vperm.xlu0 %589, %v576
        %v591 = vpop.permute.xlu0 %590
        %592 = vset.pattern.permute.xlu0 0
        %593 = vperm.xlu0 %592, %v577
        %v594 = vpop.permute.xlu0 %593
        %595 = vset.pattern.permute.xlu0 0
        %596 = vperm.xlu0 %595, %v578
        %v597 = vpop.permute.xlu0 %596
        %vm598 = vcmp.eq.s32.totalorder %v585, %v588
        %vm599 = vcmp.eq.s32.totalorder %v585, %v591
        %vm600 = vcmp.eq.s32.totalorder %v585, %v594
        %vm601 = vcmp.eq.s32.totalorder %v585, %v597
        %v602 = vsel %vm598, 1.0, 0.0
        %v603 = vsel %vm599, 1.0, 0.0
        %v604 = vsel %vm600, 1.0, 0.0
        %v605 = vsel %vm601, 1.0, 0.0
        %606 = vset.pattern.permute.xlu0 0
        %607 = vperm.xlu0 %606, %v579
        %v608 = vpop.permute.xlu0 %607
        %609 = vset.pattern.permute.xlu0 0
        %610 = vperm.xlu0 %609, %v580
        %v611 = vpop.permute.xlu0 %610
        %612 = vset.pattern.permute.xlu0 0
        %613 = vperm.xlu0 %612, %v581
        %v614 = vpop.permute.xlu0 %613
        %615 = vset.pattern.permute.xlu0 0
        %616 = vperm.xlu0 %615, %v582
        %v617 = vpop.permute.xlu0 %616
        %vm618 = vcmp.eq.s32.totalorder %v585, %v608
        %vm619 = vcmp.eq.s32.totalorder %v585, %v611
        %vm620 = vcmp.eq.s32.totalorder %v585, %v614
        %vm621 = vcmp.eq.s32.totalorder %v585, %v617
        %v622 = vsel %vm618, 1.0, 0.0
        %v623 = vsel %vm619, 1.0, 0.0
        %v624 = vsel %vm620, 1.0, 0.0
        %v625 = vsel %vm621, 1.0, 0.0
        %v626 = vlaneseq
        %v627 = vshrl.u32 %v626, 7
        %v628 = vadd.s32 %v627, 8
        %v629 = vperm.slane %v583, 0
        %vm630 = vcmp.eq.s32.totalorder %v627, %v629
        %vm631 = vcmp.eq.s32.totalorder %v628, %v629
        %v632 = vsel %vm630, 1.0, 0.0
        %v633 = vsel %vm631, 1.0, 0.0
        %v634 = vld [vmem:[%s4] sm:$0xff]
        %v635 = vld [vmem:[%s4 + $0x8] sm:$0xff]
        %v636 = vld [vmem:[%s5] sm:$0xff]
        %v637 = vld [vmem:[%s5 + $0x8] sm:$0xff]
        %v638 = vld [vmem:[%s5 + $0x10] sm:$0xff]
        %v639 = vld [vmem:[%s5 + $0x18] sm:$0xff]
        %v640 = vld [vmem:[%s5 + $0x20] sm:$0xff]
        %v641 = vld [vmem:[%s5 + $0x28] sm:$0xff]
        %v642 = vld [vmem:[%s5 + $0x30] sm:$0xff]
        %v643 = vld [vmem:[%s5 + $0x38] sm:$0xff]
        %v644 = vld [vmem:[%s5 + $0x40] sm:$0xff]
        %v645 = vld [vmem:[%s5 + $0x48] sm:$0xff]
        %v646 = vld [vmem:[%s5 + $0x50] sm:$0xff]
        %v647 = vld [vmem:[%s5 + $0x58] sm:$0xff]
        %v648 = vld [vmem:[%s5 + $0x60] sm:$0xff]
        %v649 = vld [vmem:[%s5 + $0x68] sm:$0xff]
        %v650 = vld [vmem:[%s5 + $0x70] sm:$0xff]
        %v651 = vld [vmem:[%s5 + $0x78] sm:$0xff]
        %v652 = vld [vmem:[%s6] sm:$0xff]
        %v653 = vld [vmem:[%s6 + $0x8] sm:$0xff]
        %v654 = vld [vmem:[%s6 + $0x10] sm:$0xff]
        %v655 = vld [vmem:[%s6 + $0x18] sm:$0xff]
        %v656 = vld [vmem:[%s6 + $0x20] sm:$0xff]
        %v657 = vld [vmem:[%s6 + $0x28] sm:$0xff]
        %v658 = vld [vmem:[%s6 + $0x30] sm:$0xff]
        %v659 = vld [vmem:[%s6 + $0x38] sm:$0xff]
        %v660 = vld [vmem:[%s6 + $0x40] sm:$0xff]
        %v661 = vld [vmem:[%s6 + $0x48] sm:$0xff]
        %v662 = vld [vmem:[%s6 + $0x50] sm:$0xff]
        %v663 = vld [vmem:[%s6 + $0x58] sm:$0xff]
        %v664 = vld [vmem:[%s6 + $0x60] sm:$0xff]
        %v665 = vld [vmem:[%s6 + $0x68] sm:$0xff]
        %v666 = vld [vmem:[%s6 + $0x70] sm:$0xff]
        %v667 = vld [vmem:[%s6 + $0x78] sm:$0xff]
        %v668 = vld [vmem:[%s7] sm:$0xff]
        %v669 = vld [vmem:[%s7 + $0x8] sm:$0xff]
        %v670 = vld [vmem:[%s8] sm:$0x1]
        %vm671 = vcmask 130048
        %v673 = vsel %vm671, %v573, 0
        %v676 = vsel %vm671, %v574, 0
        %678 = vmatpush.msra.mxu0 0.0
        %679 = vmatpush.msra.mxu0 0.0
        %680 = vmatpush.msra.mxu0 0.0
        %681 = vmatpush.msra.mxu0 0.0
        %682 = vmatpush.msra.mxu0 0.0
        %683 = vmatpush.msra.mxu0 0.0
        %684 = vmatpush.msra.mxu0 0.0
        %685 = vmatpush.msra.mxu0 0.0
        %686 = vmatpush.msra.mxu0 0.0
        %687 = vmatpush.msra.mxu0 0.0
        %688 = vmatpush.msra.mxu0 0.0
        %689 = vmatpush.msra.mxu0 0.0
        %690 = vmatpush.msra.mxu0 0.0
        %691 = vmatpush.msra.mxu0 0.0
        %692 = vmatpush.msra.mxu0 %v635
        %693 = vmatpush.msra.mxu0 %v634
        %694 = vmatmul.f32.gmra.mxu0 %v673
        %v695 = vpop.f32.mrf.mxu0
        %v696 = vadd.f32 0.0, %v695
        %697 = vmatmul.f32.gmra.mxu0 %v676
        %v698 = vpop.f32.mrf.mxu0
        %v699 = vadd.f32 0.0, %v698
        %700 = vdwg.mxu0
        %v702 = vsel %vm671, %v602, 0
        %v705 = vsel %vm671, %v603, 0
        %v708 = vsel %vm671, %v604, 0
        %v711 = vsel %vm671, %v605, 0
        %713 = vmatpush.msra.mxu0 0.0
        %714 = vmatpush.msra.mxu0 0.0
        %715 = vmatpush.msra.mxu0 0.0
        %716 = vmatpush.msra.mxu0 0.0
        %717 = vmatpush.msra.mxu0 0.0
        %718 = vmatpush.msra.mxu0 0.0
        %719 = vmatpush.msra.mxu0 0.0
        %720 = vmatpush.msra.mxu0 0.0
        %721 = vmatpush.msra.mxu0 0.0
        %722 = vmatpush.msra.mxu0 0.0
        %723 = vmatpush.msra.mxu0 0.0
        %724 = vmatpush.msra.mxu0 0.0
        %725 = vmatpush.msra.mxu0 0.0
        %726 = vmatpush.msra.mxu0 0.0
        %727 = vmatpush.msra.mxu0 %v699
        %728 = vmatpush.msra.mxu0 %v696
        %729 = vmatmul.f32.gmra.mxu0 %v702
        %v730 = vpop.f32.mrf.mxu0
        %v731 = vadd.f32 0.0, %v730
        %732 = vmatmul.f32.gmra.mxu0 %v705
        %v733 = vpop.f32.mrf.mxu0
        %v734 = vadd.f32 0.0, %v733
        %735 = vmatmul.f32.gmra.mxu0 %v708
        %v736 = vpop.f32.mrf.mxu0
        %v737 = vadd.f32 0.0, %v736
        %738 = vmatmul.f32.gmra.mxu0 %v711
        %v739 = vpop.f32.mrf.mxu0
        %v740 = vadd.f32 0.0, %v739
        %741 = vdwg.mxu0
        %742 = vmatpush.msra.mxu0 %v667
        %743 = vmatpush.msra.mxu0 %v666
        %744 = vmatpush.msra.mxu0 %v665
        %745 = vmatpush.msra.mxu0 %v664
        %746 = vmatpush.msra.mxu0 %v663
        %747 = vmatpush.msra.mxu0 %v662
        %748 = vmatpush.msra.mxu0 %v661
        %749 = vmatpush.msra.mxu0 %v660
        %750 = vmatpush.msra.mxu0 %v659
        %751 = vmatpush.msra.mxu0 %v658
        %752 = vmatpush.msra.mxu0 %v657
        %753 = vmatpush.msra.mxu0 %v656
        %754 = vmatpush.msra.mxu0 %v655
        %755 = vmatpush.msra.mxu0 %v654
        %756 = vmatpush.msra.mxu0 %v653
        %757 = vmatpush.msra.mxu0 %v652
        %758 = vmatmul.f32.gmra.mxu0 %v696
        %v759 = vpop.f32.mrf.mxu0
        %v760 = vadd.f32 0.0, %v759
        %761 = vmatmul.f32.gmra.mxu0 %v699
        %v762 = vpop.f32.mrf.mxu0
        %v763 = vadd.f32 0.0, %v762
        %764 = vdwg.mxu0
        %v766 = vsel %vm671, %v622, 0
        %v769 = vsel %vm671, %v623, 0
        %v772 = vsel %vm671, %v624, 0
        %v775 = vsel %vm671, %v625, 0
        %777 = vmatpush.msra.mxu0 0.0
        %778 = vmatpush.msra.mxu0 0.0
        %779 = vmatpush.msra.mxu0 0.0
        %780 = vmatpush.msra.mxu0 0.0
        %781 = vmatpush.msra.mxu0 0.0
        %782 = vmatpush.msra.mxu0 0.0
        %783 = vmatpush.msra.mxu0 0.0
        %784 = vmatpush.msra.mxu0 0.0
        %785 = vmatpush.msra.mxu0 0.0
        %786 = vmatpush.msra.mxu0 0.0
        %787 = vmatpush.msra.mxu0 0.0
        %788 = vmatpush.msra.mxu0 0.0
        %789 = vmatpush.msra.mxu0 0.0
        %790 = vmatpush.msra.mxu0 0.0
        %791 = vmatpush.msra.mxu0 %v763
        %792 = vmatpush.msra.mxu0 %v760
        %793 = vmatmul.f32.gmra.mxu0 %v766
        %v794 = vpop.f32.mrf.mxu0
        %v795 = vadd.f32 0.0, %v794
        %796 = vmatmul.f32.gmra.mxu0 %v769
        %v797 = vpop.f32.mrf.mxu0
        %v798 = vadd.f32 0.0, %v797
        %799 = vmatmul.f32.gmra.mxu0 %v772
        %v800 = vpop.f32.mrf.mxu0
        %v801 = vadd.f32 0.0, %v800
        %802 = vmatmul.f32.gmra.mxu0 %v775
        %v803 = vpop.f32.mrf.mxu0
        %v804 = vadd.f32 0.0, %v803
        %805 = vdwg.mxu0
        %806 = vmatpush.msra.mxu0 %v651
        %807 = vmatpush.msra.mxu0 %v650
        %808 = vmatpush.msra.mxu0 %v649
        %809 = vmatpush.msra.mxu0 %v648
        %810 = vmatpush.msra.mxu0 %v647
        %811 = vmatpush.msra.mxu0 %v646
        %812 = vmatpush.msra.mxu0 %v645
        %813 = vmatpush.msra.mxu0 %v644
        %814 = vmatpush.msra.mxu0 %v643
        %815 = vmatpush.msra.mxu0 %v642
        %816 = vmatpush.msra.mxu0 %v641
        %817 = vmatpush.msra.mxu0 %v640
        %818 = vmatpush.msra.mxu0 %v639
        %819 = vmatpush.msra.mxu0 %v638
        %820 = vmatpush.msra.mxu0 %v637
        %821 = vmatpush.msra.mxu0 %v636
        %822 = vmatmul.f32.gmra.mxu0 %v731
        %v823 = vpop.f32.mrf.mxu0
        %v824 = vadd.f32 %v795, %v823
        %825 = vmatmul.f32.gmra.mxu0 %v734
        %v826 = vpop.f32.mrf.mxu0
        %v827 = vadd.f32 %v798, %v826
        %828 = vmatmul.f32.gmra.mxu0 %v737
        %v829 = vpop.f32.mrf.mxu0
        %v830 = vadd.f32 %v801, %v829
        %831 = vmatmul.f32.gmra.mxu0 %v740
        %v832 = vpop.f32.mrf.mxu0
        %v833 = vadd.f32 %v804, %v832
        %834 = vdwg.mxu0
        %vm835 = vcmp.ge.f32.partialorder %v824, 0.0
        %vm836 = vcmp.ge.f32.partialorder %v827, 0.0
        %vm837 = vcmp.ge.f32.partialorder %v830, 0.0
        %vm838 = vcmp.ge.f32.partialorder %v833, 0.0
        %v839 = vmul.f32 %v824, 0.2
        %v840 = vmul.f32 %v827, 0.2
        %v841 = vmul.f32 %v830, 0.2
        %v842 = vmul.f32 %v833, 0.2
        %v843 = vsel %vm835, %v824, %v839
        %v844 = vsel %vm836, %v827, %v840
        %v845 = vsel %vm837, %v830, %v841
        %v846 = vsel %vm838, %v833, %v842
        %v847 = vmax.f32 %v843, %v844
        %v848 = vmax.f32 %v845, %v846
        %v849 = vmax.f32 %v847, %v848
        %850 = vmax.xlane.f32.xlu0 %v849
        %v851 = vpop.xlane.xlu0 %850
        %v852 = vrot.slane %v851, 4
        %v853 = vmax.f32 %v851, %v852
        %v854 = vrot.slane %v853, 2
        %v855 = vmax.f32 %v853, %v854
        %v856 = vrot.slane %v855, 1
        %v857 = vmax.f32 %v855, %v856
        %s858 = vtos %v857
        %v859 = vstv %s858
        %v860 = vsub.f32 %v843, %v859
        %v861 = vsub.f32 %v844, %v859
        %v862 = vsub.f32 %v845, %v859
        %v863 = vsub.f32 %v846, %v859
        %v864 = vmul.f32 %v860, 1.442695
        %v865 = vpow.pop %v864
        %v866 = vmul.f32 %v861, 1.442695
        %v867 = vpow.pop %v866
        %v868 = vmul.f32 %v862, 1.442695
        %v869 = vpow.pop %v868
        %v870 = vmul.f32 %v863, 1.442695
        %v871 = vpow.pop %v870
        %vm872 = vcmask 261120
        %v874 = vsel %vm872, %v632, 0
        %v877 = vsel %vm872, %v633, 0
        %879 = vmatpush.msra.mxu0 0.0
        %880 = vmatpush.msra.mxu0 0.0
        %881 = vmatpush.msra.mxu0 0.0
        %882 = vmatpush.msra.mxu0 0.0
        %883 = vmatpush.msra.mxu0 0.0
        %884 = vmatpush.msra.mxu0 0.0
        %885 = vmatpush.msra.mxu0 0.0
        %886 = vmatpush.msra.mxu0 0.0
        %887 = vmatpush.msra.mxu0 0.0
        %888 = vmatpush.msra.mxu0 0.0
        %889 = vmatpush.msra.mxu0 0.0
        %890 = vmatpush.msra.mxu0 0.0
        %891 = vmatpush.msra.mxu0 %v871
        %892 = vmatpush.msra.mxu0 %v869
        %893 = vmatpush.msra.mxu0 %v867
        %894 = vmatpush.msra.mxu0 %v865
        %895 = vmatmul.f32.gmra.mxu0 %v874
        %v896 = vpop.f32.mrf.mxu0
        %v897 = vadd.f32 0.0, %v896
        %898 = vmatmul.f32.gmra.mxu0 %v877
        %v899 = vpop.f32.mrf.mxu0
        %v900 = vadd.f32 0.0, %v899
        %901 = vdwg.mxu0
        %902 = vmatpush.msra.mxu0 0.0
        %903 = vmatpush.msra.mxu0 0.0
        %904 = vmatpush.msra.mxu0 0.0
        %905 = vmatpush.msra.mxu0 0.0
        %906 = vmatpush.msra.mxu0 0.0
        %907 = vmatpush.msra.mxu0 0.0
        %908 = vmatpush.msra.mxu0 0.0
        %909 = vmatpush.msra.mxu0 0.0
        %910 = vmatpush.msra.mxu0 0.0
        %911 = vmatpush.msra.mxu0 0.0
        %912 = vmatpush.msra.mxu0 0.0
        %913 = vmatpush.msra.mxu0 0.0
        %914 = vmatpush.msra.mxu0 0.0
        %915 = vmatpush.msra.mxu0 0.0
        %916 = vmatpush.msra.mxu0 %v900
        %917 = vmatpush.msra.mxu0 %v897
        %918 = vmatmul.f32.gmra.mxu0 %v766
        %v919 = vpop.f32.mrf.mxu0
        %v920 = vadd.f32 1e-16, %v919
        %921 = vmatmul.f32.gmra.mxu0 %v769
        %v922 = vpop.f32.mrf.mxu0
        %v923 = vadd.f32 1e-16, %v922
        %924 = vmatmul.f32.gmra.mxu0 %v772
        %v925 = vpop.f32.mrf.mxu0
        %v926 = vadd.f32 1e-16, %v925
        %927 = vmatmul.f32.gmra.mxu0 %v775
        %v928 = vpop.f32.mrf.mxu0
        %v929 = vadd.f32 1e-16, %v928
        %930 = vdwg.mxu0
        %v931 = vrcp.pop %v920
        %v932 = vmul.f32 %v920, %v931
        %v933 = vsub.f32 1.0, %v932
        %v934 = vmul.f32 %v931, %v933
        %v935 = vadd.f32 %v931, %v934
        %vm936 = vweird.f32 %v920
        %vm937 = vweird.f32 %v931
        %vm938 = vmor %vm936, %vm937
        %v939 = vsel %vm938, %v931, %v935
        %v940 = vand.u32 2147483647, %v920
        %vm941 = vcmp.eq.f32.partialorder %v940, 8.507059e+37
        %v942 = vand.u32 %v920, 2147483648
        %v943 = vor.u32 1.1754944e-38, %v942
        %v944 = vsel %vm941, %v943, %v939
        %v945 = vmul.f32 %v865, %v944
        %v946 = vrcp.pop %v923
        %v947 = vmul.f32 %v923, %v946
        %v948 = vsub.f32 1.0, %v947
        %v949 = vmul.f32 %v946, %v948
        %v950 = vadd.f32 %v946, %v949
        %vm951 = vweird.f32 %v923
        %vm952 = vweird.f32 %v946
        %vm953 = vmor %vm951, %vm952
        %v954 = vsel %vm953, %v946, %v950
        %v955 = vand.u32 2147483647, %v923
        %vm956 = vcmp.eq.f32.partialorder %v955, 8.507059e+37
        %v957 = vand.u32 %v923, 2147483648
        %v958 = vor.u32 1.1754944e-38, %v957
        %v959 = vsel %vm956, %v958, %v954
        %v960 = vmul.f32 %v867, %v959
        %v961 = vrcp.pop %v926
        %v962 = vmul.f32 %v926, %v961
        %v963 = vsub.f32 1.0, %v962
        %v964 = vmul.f32 %v961, %v963
        %v965 = vadd.f32 %v961, %v964
        %vm966 = vweird.f32 %v926
        %vm967 = vweird.f32 %v961
        %vm968 = vmor %vm966, %vm967
        %v969 = vsel %vm968, %v961, %v965
        %v970 = vand.u32 2147483647, %v926
        %vm971 = vcmp.eq.f32.partialorder %v970, 8.507059e+37
        %v972 = vand.u32 %v926, 2147483648
        %v973 = vor.u32 1.1754944e-38, %v972
        %v974 = vsel %vm971, %v973, %v969
        %v975 = vmul.f32 %v869, %v974
        %v976 = vrcp.pop %v929
        %v977 = vmul.f32 %v929, %v976
        %v978 = vsub.f32 1.0, %v977
        %v979 = vmul.f32 %v976, %v978
        %v980 = vadd.f32 %v976, %v979
        %vm981 = vweird.f32 %v929
        %vm982 = vweird.f32 %v976
        %vm983 = vmor %vm981, %vm982
        %v984 = vsel %vm983, %v976, %v980
        %v985 = vand.u32 2147483647, %v929
        %vm986 = vcmp.eq.f32.partialorder %v985, 8.507059e+37
        %v987 = vand.u32 %v929, 2147483648
        %v988 = vor.u32 1.1754944e-38, %v987
        %v989 = vsel %vm986, %v988, %v984
        %v990 = vmul.f32 %v871, %v989
        %v991 = vmul.f32 %v731, %v945
        %v992 = vmul.f32 %v734, %v960
        %v993 = vmul.f32 %v737, %v975
        %v994 = vmul.f32 %v740, %v990
        %995 = vmatpush.msra.mxu0 0.0
        %996 = vmatpush.msra.mxu0 0.0
        %997 = vmatpush.msra.mxu0 0.0
        %998 = vmatpush.msra.mxu0 0.0
        %999 = vmatpush.msra.mxu0 0.0
        %1000 = vmatpush.msra.mxu0 0.0
        %1001 = vmatpush.msra.mxu0 0.0
        %1002 = vmatpush.msra.mxu0 0.0
        %1003 = vmatpush.msra.mxu0 0.0
        %1004 = vmatpush.msra.mxu0 0.0
        %1005 = vmatpush.msra.mxu0 0.0
        %1006 = vmatpush.msra.mxu0 0.0
        %1007 = vmatpush.msra.mxu0 0.0
        %1008 = vmatpush.msra.mxu0 0.0
        %1009 = vmatpush.msra.mxu0 %v669
        %1010 = vmatpush.msra.mxu0 %v668
        %1011 = vmatmul.f32.gmra.mxu0 %v673
        %v1012 = vpop.f32.mrf.mxu0
        %v1013 = vadd.f32 0.0, %v1012
        %1014 = vmatmul.f32.gmra.mxu0 %v676
        %v1015 = vpop.f32.mrf.mxu0
        %v1016 = vadd.f32 0.0, %v1015
        %1017 = vdwg.mxu0
        %1018 = vmatpush.msra.mxu0 0.0
        %1019 = vmatpush.msra.mxu0 0.0
        %1020 = vmatpush.msra.mxu0 0.0
        %1021 = vmatpush.msra.mxu0 0.0
        %1022 = vmatpush.msra.mxu0 0.0
        %1023 = vmatpush.msra.mxu0 0.0
        %1024 = vmatpush.msra.mxu0 0.0
        %1025 = vmatpush.msra.mxu0 0.0
        %1026 = vmatpush.msra.mxu0 0.0
        %1027 = vmatpush.msra.mxu0 0.0
        %1028 = vmatpush.msra.mxu0 0.0
        %1029 = vmatpush.msra.mxu0 0.0
        %1030 = vmatpush.msra.mxu0 %v994
        %1031 = vmatpush.msra.mxu0 %v993
        %1032 = vmatpush.msra.mxu0 %v992
        %1033 = vmatpush.msra.mxu0 %v991
        %1034 = vmatmul.f32.gmra.mxu0 %v874
        %v1035 = vpop.f32.mrf.mxu0
        %v1036 = vadd.f32 %v1013, %v1035
        %1037 = vmatmul.f32.gmra.mxu0 %v877
        %v1038 = vpop.f32.mrf.mxu0
        %v1039 = vadd.f32 %v1016, %v1038
        %1040 = vdwg.mxu0
        %v1042 = vperm.slane %v670, 0
        %v1044 = vadd.f32 %v1036, %v1042
        %v1045 = vadd.f32 %v1039, %v1042
        %vm1046 = vcmp.gt.f32.partialorder %v1044, 0.0
        %vm1047 = vcmp.gt.f32.partialorder %v1045, 0.0
        %v1048 = vmin.f32 %v1044, 0.0
        %v1049 = vmin.f32 %v1045, 0.0
        %v1050 = vmul.f32 %v1048, 1.442695
        %v1051 = vpow.pop %v1050
        %v1052 = vmul.f32 %v1049, 1.442695
        %v1053 = vpow.pop %v1052
        %v1054 = vsub.f32 %v1051, 1.0
        %v1055 = vsub.f32 %v1053, 1.0
        %v1056 = vsel %vm1046, %v1044, %v1054
        %v1057 = vsel %vm1047, %v1045, %v1055
        %v1058 = vld [vmem:[%s9] sm:$0xff]
        %v1059 = vld [vmem:[%s9 + $0x8] sm:$0xff]
        %v1060 = vld [vmem:[%s9 + $0x10] sm:$0xff]
        %v1061 = vld [vmem:[%s9 + $0x18] sm:$0xff]
        %v1062 = vld [vmem:[%s9 + $0x20] sm:$0xff]
        %v1063 = vld [vmem:[%s9 + $0x28] sm:$0xff]
        %v1064 = vld [vmem:[%s9 + $0x30] sm:$0xff]
        %v1065 = vld [vmem:[%s9 + $0x38] sm:$0xff]
        %v1066 = vld [vmem:[%s9 + $0x40] sm:$0xff]
        %v1067 = vld [vmem:[%s9 + $0x48] sm:$0xff]
        %v1068 = vld [vmem:[%s9 + $0x50] sm:$0xff]
        %v1069 = vld [vmem:[%s9 + $0x58] sm:$0xff]
        %v1070 = vld [vmem:[%s9 + $0x60] sm:$0xff]
        %v1071 = vld [vmem:[%s9 + $0x68] sm:$0xff]
        %v1072 = vld [vmem:[%s9 + $0x70] sm:$0xff]
        %v1073 = vld [vmem:[%s9 + $0x78] sm:$0xff]
        %v1074 = vld [vmem:[%s10] sm:$0xff]
        %v1075 = vld [vmem:[%s10 + $0x8] sm:$0xff]
        %v1076 = vld [vmem:[%s10 + $0x10] sm:$0xff]
        %v1077 = vld [vmem:[%s10 + $0x18] sm:$0xff]
        %v1078 = vld [vmem:[%s11] sm:$0xff]
        %v1079 = vld [vmem:[%s11 + $0x8] sm:$0xff]
        %v1080 = vld [vmem:[%s11 + $0x10] sm:$0xff]
        %v1081 = vld [vmem:[%s11 + $0x18] sm:$0xff]
        %v1082 = vld [vmem:[%s12] sm:$0xff]
        %v1083 = vld [vmem:[%s12 + $0x8] sm:$0xff]
        %v1084 = vld [vmem:[%s12 + $0x10] sm:$0xff]
        %v1085 = vld [vmem:[%s12 + $0x18] sm:$0xff]
        %v1086 = vld [vmem:[%s12 + $0x20] sm:$0xff]
        %v1087 = vld [vmem:[%s12 + $0x28] sm:$0xff]
        %v1088 = vld [vmem:[%s12 + $0x30] sm:$0xff]
        %v1089 = vld [vmem:[%s12 + $0x38] sm:$0xff]
        %v1090 = vld [vmem:[%s12 + $0x40] sm:$0xff]
        %v1091 = vld [vmem:[%s12 + $0x48] sm:$0xff]
        %v1092 = vld [vmem:[%s12 + $0x50] sm:$0xff]
        %v1093 = vld [vmem:[%s12 + $0x58] sm:$0xff]
        %v1094 = vld [vmem:[%s12 + $0x60] sm:$0xff]
        %v1095 = vld [vmem:[%s12 + $0x68] sm:$0xff]
        %v1096 = vld [vmem:[%s12 + $0x70] sm:$0xff]
        %v1097 = vld [vmem:[%s12 + $0x78] sm:$0xff]
        %v1098 = vld [vmem:[%s13] sm:$0x1]
        %v1099 = vld [vmem:[%s14] sm:$0xff]
        %v1100 = vld [vmem:[%s14 + $0x8] sm:$0xff]
        %v1101 = vld [vmem:[%s14 + $0x10] sm:$0xff]
        %v1102 = vld [vmem:[%s14 + $0x18] sm:$0xff]
        %1103 = vmatpush.msra.mxu0 %v1073
        %1104 = vmatpush.msra.mxu0 %v1072
        %1105 = vmatpush.msra.mxu0 %v1071
        %1106 = vmatpush.msra.mxu0 %v1070
        %1107 = vmatpush.msra.mxu0 %v1069
        %1108 = vmatpush.msra.mxu0 %v1068
        %1109 = vmatpush.msra.mxu0 %v1067
        %1110 = vmatpush.msra.mxu0 %v1066
        %1111 = vmatpush.msra.mxu0 %v1065
        %1112 = vmatpush.msra.mxu0 %v1064
        %1113 = vmatpush.msra.mxu0 %v1063
        %1114 = vmatpush.msra.mxu0 %v1062
        %1115 = vmatpush.msra.mxu0 %v1061
        %1116 = vmatpush.msra.mxu0 %v1060
        %1117 = vmatpush.msra.mxu0 %v1059
        %1118 = vmatpush.msra.mxu0 %v1058
        %1119 = vmatmul.f32.gmra.mxu0 %v1056
        %v1120 = vpop.f32.mrf.mxu0
        %v1121 = vadd.f32 0.0, %v1120
        %1122 = vmatmul.f32.gmra.mxu0 %v1057
        %v1123 = vpop.f32.mrf.mxu0
        %v1124 = vadd.f32 0.0, %v1123
        %1125 = vdwg.mxu0
        %1126 = vmatpush.msra.mxu0 0.0
        %1127 = vmatpush.msra.mxu0 0.0
        %1128 = vmatpush.msra.mxu0 0.0
        %1129 = vmatpush.msra.mxu0 0.0
        %1130 = vmatpush.msra.mxu0 0.0
        %1131 = vmatpush.msra.mxu0 0.0
        %1132 = vmatpush.msra.mxu0 0.0
        %1133 = vmatpush.msra.mxu0 0.0
        %1134 = vmatpush.msra.mxu0 0.0
        %1135 = vmatpush.msra.mxu0 0.0
        %1136 = vmatpush.msra.mxu0 0.0
        %1137 = vmatpush.msra.mxu0 0.0
        %1138 = vmatpush.msra.mxu0 0.0
        %1139 = vmatpush.msra.mxu0 0.0
        %1140 = vmatpush.msra.mxu0 %v1124
        %1141 = vmatpush.msra.mxu0 %v1121
        %1142 = vmatmul.f32.gmra.mxu0 %v702
        %v1143 = vpop.f32.mrf.mxu0
        %v1144 = vadd.f32 0.0, %v1143
        %1145 = vmatmul.f32.gmra.mxu0 %v705
        %v1146 = vpop.f32.mrf.mxu0
        %v1147 = vadd.f32 0.0, %v1146
        %1148 = vmatmul.f32.gmra.mxu0 %v708
        %v1149 = vpop.f32.mrf.mxu0
        %v1150 = vadd.f32 0.0, %v1149
        %1151 = vmatmul.f32.gmra.mxu0 %v711
        %v1152 = vpop.f32.mrf.mxu0
        %v1153 = vadd.f32 0.0, %v1152
        %1154 = vdwg.mxu0
        %v1156 = vsel %vm872, %v1121, 0
        %v1159 = vsel %vm872, %v1124, 0
        %1161 = vmatpush.msra.mxu0 0.0
        %1162 = vmatpush.msra.mxu0 0.0
        %1163 = vmatpush.msra.mxu0 0.0
        %1164 = vmatpush.msra.mxu0 0.0
        %1165 = vmatpush.msra.mxu0 0.0
        %1166 = vmatpush.msra.mxu0 0.0
        %1167 = vmatpush.msra.mxu0 0.0
        %1168 = vmatpush.msra.mxu0 0.0
        %1169 = vmatpush.msra.mxu0 0.0
        %1170 = vmatpush.msra.mxu0 0.0
        %1171 = vmatpush.msra.mxu0 0.0
        %1172 = vmatpush.msra.mxu0 0.0
        %1173 = vmatpush.msra.mxu0 %v1081
        %1174 = vmatpush.msra.mxu0 %v1080
        %1175 = vmatpush.msra.mxu0 %v1079
        %1176 = vmatpush.msra.mxu0 %v1078
        %1177 = vmatmul.f32.gmra.mxu0 %v1156
        %v1178 = vpop.f32.mrf.mxu0
        %v1179 = vadd.f32 0.0, %v1178
        %1180 = vmatmul.f32.gmra.mxu0 %v1159
        %v1181 = vpop.f32.mrf.mxu0
        %v1182 = vadd.f32 0.0, %v1181
        %1183 = vdwg.mxu0
        %1184 = vmatpush.msra.mxu0 0.0
        %1185 = vmatpush.msra.mxu0 0.0
        %1186 = vmatpush.msra.mxu0 0.0
        %1187 = vmatpush.msra.mxu0 0.0
        %1188 = vmatpush.msra.mxu0 0.0
        %1189 = vmatpush.msra.mxu0 0.0
        %1190 = vmatpush.msra.mxu0 0.0
        %1191 = vmatpush.msra.mxu0 0.0
        %1192 = vmatpush.msra.mxu0 0.0
        %1193 = vmatpush.msra.mxu0 0.0
        %1194 = vmatpush.msra.mxu0 0.0
        %1195 = vmatpush.msra.mxu0 0.0
        %1196 = vmatpush.msra.mxu0 0.0
        %1197 = vmatpush.msra.mxu0 0.0
        %1198 = vmatpush.msra.mxu0 %v1182
        %1199 = vmatpush.msra.mxu0 %v1179
        %1200 = vmatmul.f32.gmra.mxu0 %v766
        %v1201 = vpop.f32.mrf.mxu0
        %v1202 = vadd.f32 0.0, %v1201
        %1203 = vmatmul.f32.gmra.mxu0 %v769
        %v1204 = vpop.f32.mrf.mxu0
        %v1205 = vadd.f32 0.0, %v1204
        %1206 = vmatmul.f32.gmra.mxu0 %v772
        %v1207 = vpop.f32.mrf.mxu0
        %v1208 = vadd.f32 0.0, %v1207
        %1209 = vmatmul.f32.gmra.mxu0 %v775
        %v1210 = vpop.f32.mrf.mxu0
        %v1211 = vadd.f32 0.0, %v1210
        %1212 = vdwg.mxu0
        %v1214 = vsel %vm872, %v1144, 0
        %v1217 = vsel %vm872, %v1147, 0
        %v1220 = vsel %vm872, %v1150, 0
        %v1223 = vsel %vm872, %v1153, 0
        %1225 = vmatpush.msra.mxu0 0.0
        %1226 = vmatpush.msra.mxu0 0.0
        %1227 = vmatpush.msra.mxu0 0.0
        %1228 = vmatpush.msra.mxu0 0.0
        %1229 = vmatpush.msra.mxu0 0.0
        %1230 = vmatpush.msra.mxu0 0.0
        %1231 = vmatpush.msra.mxu0 0.0
        %1232 = vmatpush.msra.mxu0 0.0
        %1233 = vmatpush.msra.mxu0 0.0
        %1234 = vmatpush.msra.mxu0 0.0
        %1235 = vmatpush.msra.mxu0 0.0
        %1236 = vmatpush.msra.mxu0 0.0
        %1237 = vmatpush.msra.mxu0 %v1077
        %1238 = vmatpush.msra.mxu0 %v1076
        %1239 = vmatpush.msra.mxu0 %v1075
        %1240 = vmatpush.msra.mxu0 %v1074
        %1241 = vmatmul.f32.gmra.mxu0 %v1214
        %v1242 = vpop.f32.mrf.mxu0
        %v1243 = vadd.f32 %v1202, %v1242
        %1244 = vmatmul.f32.gmra.mxu0 %v1217
        %v1245 = vpop.f32.mrf.mxu0
        %v1246 = vadd.f32 %v1205, %v1245
        %1247 = vmatmul.f32.gmra.mxu0 %v1220
        %v1248 = vpop.f32.mrf.mxu0
        %v1249 = vadd.f32 %v1208, %v1248
        %1250 = vmatmul.f32.gmra.mxu0 %v1223
        %v1251 = vpop.f32.mrf.mxu0
        %v1252 = vadd.f32 %v1211, %v1251
        %1253 = vdwg.mxu0
        %vm1254 = vcmp.ge.f32.partialorder %v1243, 0.0
        %vm1255 = vcmp.ge.f32.partialorder %v1246, 0.0
        %vm1256 = vcmp.ge.f32.partialorder %v1249, 0.0
        %vm1257 = vcmp.ge.f32.partialorder %v1252, 0.0
        %v1258 = vmul.f32 %v1243, 0.2
        %v1259 = vmul.f32 %v1246, 0.2
        %v1260 = vmul.f32 %v1249, 0.2
        %v1261 = vmul.f32 %v1252, 0.2
        %v1262 = vsel %vm1254, %v1243, %v1258
        %v1263 = vsel %vm1255, %v1246, %v1259
        %v1264 = vsel %vm1256, %v1249, %v1260
        %v1265 = vsel %vm1257, %v1252, %v1261
        %v1266 = vsel %vm872, %v1262, -inf
        %v1267 = vsel %vm872, %v1263, -inf
        %v1268 = vsel %vm872, %v1264, -inf
        %v1269 = vsel %vm872, %v1265, -inf
        %v1270 = vmax.f32 %v1266, %v1267
        %v1271 = vmax.f32 %v1268, %v1269
        %v1272 = vmax.f32 %v1270, %v1271
        %1273 = vmax.xlane.f32.xlu0 %v1272
        %v1274 = vpop.xlane.xlu0 %1273
        %v1275 = vrot.slane %v1274, 4
        %v1276 = vmax.f32 %v1274, %v1275
        %v1277 = vrot.slane %v1276, 2
        %v1278 = vmax.f32 %v1276, %v1277
        %v1279 = vrot.slane %v1278, 1
        %v1280 = vmax.f32 %v1278, %v1279
        %s1281 = vtos %v1280
        %v1282 = vstv %s1281
        %v1283 = vsub.f32 %v1262, %v1282
        %v1284 = vsub.f32 %v1263, %v1282
        %v1285 = vsub.f32 %v1264, %v1282
        %v1286 = vsub.f32 %v1265, %v1282
        %v1287 = vmul.f32 %v1283, 1.442695
        %v1288 = vpow.pop %v1287
        %v1289 = vmul.f32 %v1284, 1.442695
        %v1290 = vpow.pop %v1289
        %v1291 = vmul.f32 %v1285, 1.442695
        %v1292 = vpow.pop %v1291
        %v1293 = vmul.f32 %v1286, 1.442695
        %v1294 = vpow.pop %v1293
        %1295 = vmatpush.msra.mxu0 0.0
        %1296 = vmatpush.msra.mxu0 0.0
        %1297 = vmatpush.msra.mxu0 0.0
        %1298 = vmatpush.msra.mxu0 0.0
        %1299 = vmatpush.msra.mxu0 0.0
        %1300 = vmatpush.msra.mxu0 0.0
        %1301 = vmatpush.msra.mxu0 0.0
        %1302 = vmatpush.msra.mxu0 0.0
        %1303 = vmatpush.msra.mxu0 0.0
        %1304 = vmatpush.msra.mxu0 0.0
        %1305 = vmatpush.msra.mxu0 0.0
        %1306 = vmatpush.msra.mxu0 0.0
        %1307 = vmatpush.msra.mxu0 %v1294
        %1308 = vmatpush.msra.mxu0 %v1292
        %1309 = vmatpush.msra.mxu0 %v1290
        %1310 = vmatpush.msra.mxu0 %v1288
        %1311 = vmatmul.f32.gmra.mxu0 %v874
        %v1312 = vpop.f32.mrf.mxu0
        %v1313 = vadd.f32 0.0, %v1312
        %1314 = vmatmul.f32.gmra.mxu0 %v877
        %v1315 = vpop.f32.mrf.mxu0
        %v1316 = vadd.f32 0.0, %v1315
        %1317 = vdwg.mxu0
        %1318 = vmatpush.msra.mxu0 0.0
        %1319 = vmatpush.msra.mxu0 0.0
        %1320 = vmatpush.msra.mxu0 0.0
        %1321 = vmatpush.msra.mxu0 0.0
        %1322 = vmatpush.msra.mxu0 0.0
        %1323 = vmatpush.msra.mxu0 0.0
        %1324 = vmatpush.msra.mxu0 0.0
        %1325 = vmatpush.msra.mxu0 0.0
        %1326 = vmatpush.msra.mxu0 0.0
        %1327 = vmatpush.msra.mxu0 0.0
        %1328 = vmatpush.msra.mxu0 0.0
        %1329 = vmatpush.msra.mxu0 0.0
        %1330 = vmatpush.msra.mxu0 0.0
        %1331 = vmatpush.msra.mxu0 0.0
        %1332 = vmatpush.msra.mxu0 %v1316
        %1333 = vmatpush.msra.mxu0 %v1313
        %1334 = vmatmul.f32.gmra.mxu0 %v766
        %v1335 = vpop.f32.mrf.mxu0
        %v1336 = vadd.f32 1e-16, %v1335
        %1337 = vmatmul.f32.gmra.mxu0 %v769
        %v1338 = vpop.f32.mrf.mxu0
        %v1339 = vadd.f32 1e-16, %v1338
        %1340 = vmatmul.f32.gmra.mxu0 %v772
        %v1341 = vpop.f32.mrf.mxu0
        %v1342 = vadd.f32 1e-16, %v1341
        %1343 = vmatmul.f32.gmra.mxu0 %v775
        %v1344 = vpop.f32.mrf.mxu0
        %v1345 = vadd.f32 1e-16, %v1344
        %1346 = vdwg.mxu0
        %v1347 = vrcp.pop %v1336
        %v1348 = vmul.f32 %v1336, %v1347
        %v1349 = vsub.f32 1.0, %v1348
        %v1350 = vmul.f32 %v1347, %v1349
        %v1351 = vadd.f32 %v1347, %v1350
        %vm1352 = vweird.f32 %v1336
        %vm1353 = vweird.f32 %v1347
        %vm1354 = vmor %vm1352, %vm1353
        %v1355 = vsel %vm1354, %v1347, %v1351
        %v1356 = vand.u32 2147483647, %v1336
        %vm1357 = vcmp.eq.f32.partialorder %v1356, 8.507059e+37
        %v1358 = vand.u32 %v1336, 2147483648
        %v1359 = vor.u32 1.1754944e-38, %v1358
        %v1360 = vsel %vm1357, %v1359, %v1355
        %v1361 = vmul.f32 %v1288, %v1360
        %v1362 = vrcp.pop %v1339
        %v1363 = vmul.f32 %v1339, %v1362
        %v1364 = vsub.f32 1.0, %v1363
        %v1365 = vmul.f32 %v1362, %v1364
        %v1366 = vadd.f32 %v1362, %v1365
        %vm1367 = vweird.f32 %v1339
        %vm1368 = vweird.f32 %v1362
        %vm1369 = vmor %vm1367, %vm1368
        %v1370 = vsel %vm1369, %v1362, %v1366
        %v1371 = vand.u32 2147483647, %v1339
        %vm1372 = vcmp.eq.f32.partialorder %v1371, 8.507059e+37
        %v1373 = vand.u32 %v1339, 2147483648
        %v1374 = vor.u32 1.1754944e-38, %v1373
        %v1375 = vsel %vm1372, %v1374, %v1370
        %v1376 = vmul.f32 %v1290, %v1375
        %v1377 = vrcp.pop %v1342
        %v1378 = vmul.f32 %v1342, %v1377
        %v1379 = vsub.f32 1.0, %v1378
        %v1380 = vmul.f32 %v1377, %v1379
        %v1381 = vadd.f32 %v1377, %v1380
        %vm1382 = vweird.f32 %v1342
        %vm1383 = vweird.f32 %v1377
        %vm1384 = vmor %vm1382, %vm1383
        %v1385 = vsel %vm1384, %v1377, %v1381
        %v1386 = vand.u32 2147483647, %v1342
        %vm1387 = vcmp.eq.f32.partialorder %v1386, 8.507059e+37
        %v1388 = vand.u32 %v1342, 2147483648
        %v1389 = vor.u32 1.1754944e-38, %v1388
        %v1390 = vsel %vm1387, %v1389, %v1385
        %v1391 = vmul.f32 %v1292, %v1390
        %v1392 = vrcp.pop %v1345
        %v1393 = vmul.f32 %v1345, %v1392
        %v1394 = vsub.f32 1.0, %v1393
        %v1395 = vmul.f32 %v1392, %v1394
        %v1396 = vadd.f32 %v1392, %v1395
        %vm1397 = vweird.f32 %v1345
        %vm1398 = vweird.f32 %v1392
        %vm1399 = vmor %vm1397, %vm1398
        %v1400 = vsel %vm1399, %v1392, %v1396
        %v1401 = vand.u32 2147483647, %v1345
        %vm1402 = vcmp.eq.f32.partialorder %v1401, 8.507059e+37
        %v1403 = vand.u32 %v1345, 2147483648
        %v1404 = vor.u32 1.1754944e-38, %v1403
        %v1405 = vsel %vm1402, %v1404, %v1400
        %v1406 = vmul.f32 %v1294, %v1405
        %v1407 = vmul.f32 %v1144, %v1361
        %v1408 = vmul.f32 %v1147, %v1376
        %v1409 = vmul.f32 %v1150, %v1391
        %v1410 = vmul.f32 %v1153, %v1406
        %1411 = vmatpush.msra.mxu0 %v1097
        %1412 = vmatpush.msra.mxu0 %v1096
        %1413 = vmatpush.msra.mxu0 %v1095
        %1414 = vmatpush.msra.mxu0 %v1094
        %1415 = vmatpush.msra.mxu0 %v1093
        %1416 = vmatpush.msra.mxu0 %v1092
        %1417 = vmatpush.msra.mxu0 %v1091
        %1418 = vmatpush.msra.mxu0 %v1090
        %1419 = vmatpush.msra.mxu0 %v1089
        %1420 = vmatpush.msra.mxu0 %v1088
        %1421 = vmatpush.msra.mxu0 %v1087
        %1422 = vmatpush.msra.mxu0 %v1086
        %1423 = vmatpush.msra.mxu0 %v1085
        %1424 = vmatpush.msra.mxu0 %v1084
        %1425 = vmatpush.msra.mxu0 %v1083
        %1426 = vmatpush.msra.mxu0 %v1082
        %1427 = vmatmul.f32.gmra.mxu0 %v1056
        %v1428 = vpop.f32.mrf.mxu0
        %v1429 = vadd.f32 0.0, %v1428
        %1430 = vmatmul.f32.gmra.mxu0 %v1057
        %v1431 = vpop.f32.mrf.mxu0
        %v1432 = vadd.f32 0.0, %v1431
        %1433 = vdwg.mxu0
        %1434 = vmatpush.msra.mxu0 0.0
        %1435 = vmatpush.msra.mxu0 0.0
        %1436 = vmatpush.msra.mxu0 0.0
        %1437 = vmatpush.msra.mxu0 0.0
        %1438 = vmatpush.msra.mxu0 0.0
        %1439 = vmatpush.msra.mxu0 0.0
        %1440 = vmatpush.msra.mxu0 0.0
        %1441 = vmatpush.msra.mxu0 0.0
        %1442 = vmatpush.msra.mxu0 0.0
        %1443 = vmatpush.msra.mxu0 0.0
        %1444 = vmatpush.msra.mxu0 0.0
        %1445 = vmatpush.msra.mxu0 0.0
        %1446 = vmatpush.msra.mxu0 %v1410
        %1447 = vmatpush.msra.mxu0 %v1409
        %1448 = vmatpush.msra.mxu0 %v1408
        %1449 = vmatpush.msra.mxu0 %v1407
        %1450 = vmatmul.f32.gmra.mxu0 %v874
        %v1451 = vpop.f32.mrf.mxu0
        %v1452 = vadd.f32 %v1429, %v1451
        %1453 = vmatmul.f32.gmra.mxu0 %v877
        %v1454 = vpop.f32.mrf.mxu0
        %v1455 = vadd.f32 %v1432, %v1454
        %1456 = vdwg.mxu0
        %v1458 = vperm.slane %v1098, 0
        %v1461 = vsel %vm872, %v1452, 0
        %v1464 = vsel %vm872, %v1455, 0
        %1466 = vmatpush.msra.mxu0 0.0
        %1467 = vmatpush.msra.mxu0 0.0
        %1468 = vmatpush.msra.mxu0 0.0
        %1469 = vmatpush.msra.mxu0 0.0
        %1470 = vmatpush.msra.mxu0 0.0
        %1471 = vmatpush.msra.mxu0 0.0
        %1472 = vmatpush.msra.mxu0 0.0
        %1473 = vmatpush.msra.mxu0 0.0
        %1474 = vmatpush.msra.mxu0 0.0
        %1475 = vmatpush.msra.mxu0 0.0
        %1476 = vmatpush.msra.mxu0 0.0
        %1477 = vmatpush.msra.mxu0 0.0
        %1478 = vmatpush.msra.mxu0 %v1102
        %1479 = vmatpush.msra.mxu0 %v1101
        %1480 = vmatpush.msra.mxu0 %v1100
        %1481 = vmatpush.msra.mxu0 %v1099
        %1482 = vmatmul.f32.gmra.mxu0 %v1461
        %v1483 = vpop.f32.mrf.mxu0
        %v1484 = vadd.f32 %v1458, %v1483
        %1485 = vmatmul.f32.gmra.mxu0 %v1464
        %v1486 = vpop.f32.mrf.mxu0
        %v1487 = vadd.f32 %v1458, %v1486
        %1488 = vdwg.mxu0
        %v1489 = vld [vmem:[%s15] sm:$0x1]
        %v1491 = vsel %vm671, %v1489, 0
        %1493 = vmatpush.msra.mxu0 0.0
        %1494 = vmatpush.msra.mxu0 0.0
        %1495 = vmatpush.msra.mxu0 0.0
        %1496 = vmatpush.msra.mxu0 0.0
        %1497 = vmatpush.msra.mxu0 0.0
        %1498 = vmatpush.msra.mxu0 0.0
        %1499 = vmatpush.msra.mxu0 0.0
        %1500 = vmatpush.msra.mxu0 0.0
        %1501 = vmatpush.msra.mxu0 0.0
        %1502 = vmatpush.msra.mxu0 0.0
        %1503 = vmatpush.msra.mxu0 0.0
        %1504 = vmatpush.msra.mxu0 0.0
        %1505 = vmatpush.msra.mxu0 0.0
        %1506 = vmatpush.msra.mxu0 0.0
        %1507 = vmatpush.msra.mxu0 %v1487
        %1508 = vmatpush.msra.mxu0 %v1484
        %1509 = vmatmul.f32.gmra.mxu0 %v1491
        %v1510 = vpop.f32.mrf.mxu0
        %v1511 = vadd.f32 0.0, %v1510
        %1512 = vdwg.mxu0
        %vm1513 = vcmask 57344
        %1514 = vst.msk [vmem:[%s554] sm:$0x1] %vm1513, %v1511
        %s1515 = sand.u32 %s394, 1
        %s1516 = scalar_lea.sflag [#allocation3], %s1515
        %s1517 = sand.u32 %s394, 1
        %s1518 = scalar_lea.vmem [#allocation2], %s1517
        // Predicated region
        $region85: #{_lambda_.1} parent=83 // pred_check
          %p1519 = pneg %p404
        $region86: #{_lambda_.1} parent=83 // pred_check_branch
          %1521 = sbr.rel (%p1519) target = $region88
        $region87: #{_lambda_.1} parent=83 // pred_region
          %1523 = vsyncadd %s1516, 0
          %s1524 = scalar_lea.hbm %s16, %s30
          %s1526 = sshll.u32 %s1518, 4
          %s1527 = int_to_ptr.vmem [resolvable:$true] %s1526
          %s1528 = sshll.u32 %s1524, 4
          %s1529 = int_to_ptr.hbm [resolvable:$true] %s1528
          %1531 = dma.vmem_to_hbm [thread:$0]  %s1527, 16, %s1529, %s1516
        $region88: #{_lambda_.1} parent=83 // pred_fallthru
          _
      $region84: #{_lambda_.1} parent=5 // pred_fallthru
        _
      %p1532 = scmp.le.s32.totalorder 2, %s25
      // Predicated region
      $region89: #{_lambda_.1} parent=5 // pred_check
        %p1533 = pneg %p1532
      $region90: #{_lambda_.1} parent=5 // pred_check_branch
        %1535 = sbr.rel (%p1533) target = $region92
      $region91: #{_lambda_.1} parent=5 // pred_region
        %s1536 = ssub.s32 %s25, 2
        // Predicated region
        $region93: #{_lambda_.1} parent=91 // pred_check
          %p1537 = pneg %p410
        $region94: #{_lambda_.1} parent=91 // pred_check_branch
          %1539 = sbr.rel (%p1537) target = $region96
        $region95: #{_lambda_.1} parent=91 // pred_region
          %s1540 = sand.u32 %s395, 1
          %s1541 = scalar_lea.sflag [#allocation3], %s1540
          %s1542 = sand.u32 %s395, 1
          %s1543 = scalar_lea.vmem [#allocation2], %s1542
          %1545 = dma.done %s1541, 16
        $region96: #{_lambda_.1} parent=91 // pred_fallthru
          _
      $region92: #{_lambda_.1} parent=5 // pred_fallthru
        _
    $region6: #{_lambda_.1} parent=1 // loop_footer
      %s29 = sadd.s32 1, %s25
    $region7: #{_lambda_.1} parent=1 // loop_footer_branch
      %24 = sbr.rel target = $region3
    $region8: #{_lambda_.1} parent=1 // loop_exit
      _
    %1546 = vsyncpa [#allocation3], 1
    %s1547 = scalar_lea.sflag [#allocation3], 1
    %1548 = vsyncpa %s1547, 1

</llo_original>
